<compile_context>
chip_gen: v5e
topology: v5e:2x2
jax: 0.10.0
libtpu: 0.0.40
codegen_flags: <defaults>
</compile_context>

<pallas_src>
import math

import jax
import jax.numpy as jnp
from jax.experimental import pallas as pl

# ---------------------------------------------------------------------------
# Model configuration (small, deterministic, synthetic weights)
# ---------------------------------------------------------------------------
BATCH = 2
IN_CH = 3
IMG = 16
PATCH = 8
NUM_PATCHES = (IMG // PATCH) * (IMG // PATCH)   # 4
SEQ = NUM_PATCHES + 1                           # 5 (CLS + patches)
TOKENS = BATCH * SEQ                            # 10 rows in the token slab
HIDDEN = 32
NUM_HEADS = 4
HEAD_DIM = HIDDEN // NUM_HEADS                  # 8
MLP_DIM = 64
NUM_LAYERS = 2
LN_EPS = 1e-12                                  # HF ViT default layer_norm_eps
CPP = IN_CH * PATCH * PATCH                     # 192 (flattened patch length)
ROWS = BATCH * NUM_HEADS * SEQ                  # 40 expanded (b, head, query) rows
ATT_SCALE = 1.0 / math.sqrt(HEAD_DIM)
NEG_INF = -1e30


# ---------------------------------------------------------------------------
# In-kernel helpers (all elementwise math stays f32)
# ---------------------------------------------------------------------------
def _layernorm(x, gamma, beta):
    mean = jnp.mean(x, axis=-1, keepdims=True)
    cen = x - mean
    var = jnp.mean(cen * cen, axis=-1, keepdims=True)
    return cen * jax.lax.rsqrt(var + LN_EPS) * gamma + beta


def _gelu(x):
    # TODO(synk): tanh-approx GELU; HF ViT default is exact erf-GELU, so
    # last_hidden_state deviates slightly from a real checkpoint.
    c = math.sqrt(2.0 / math.pi)
    return 0.5 * x * (1.0 + jnp.tanh(c * (x + 0.044715 * x * x * x)))


def _bf16(x):
    return x.astype(jnp.bfloat16)


# ---------------------------------------------------------------------------
# Single fused kernel: patch-embed -> CLS/+pos -> N encoder layers -> final LN
# ---------------------------------------------------------------------------
def _fused_vit_kernel(patches_ref, w_pe_ref, tok_bias_ref,
                      expand_ref, expand_t_ref, head_mask_ref, attn_bias_ref,
                      ln1_ref, wqkv_ref, bqkv_ref, wo_ref, bo_ref,
                      ln2_ref, w1_ref, b1_ref, w2_ref, b2_ref,
                      lnf_g_ref, lnf_b_ref,
                      o_ref):
    D = HIDDEN

    # --- patch embed + token assembly: one matmul + one full-slab add.
    #     CLS rows of `patches` are zero; cls/pos/conv-bias live in tok_bias. ---
    h = (jnp.dot(_bf16(patches_ref[...]), w_pe_ref[...],
                 preferred_element_type=jnp.float32) + tok_bias_ref[...])

    expand = expand_ref[...]        # (ROWS, TOKENS) bf16 0/1 row-gather matrix
    expand_t = expand_t_ref[...]    # (TOKENS, ROWS) bf16 fold-back matrix
    head_mask = head_mask_ref[...]  # (ROWS, D)      f32 per-head column mask
    attn_bias = attn_bias_ref[...]  # (ROWS, TOKENS) f32 0 / -1e30 cross-batch

    # --- pre-LN encoder layers, Python-unrolled; h stays a live value ---
    for l in range(NUM_LAYERS):
        # ---- multi-head self-attention ----
        ln1 = ln1_ref[l]                                  # (2, D): gamma; beta
        x = _layernorm(h, ln1[0:1, :], ln1[1:2, :])
        qkv = (jnp.dot(_bf16(x), wqkv_ref[l],
                       preferred_element_type=jnp.float32) + bqkv_ref[l])
        q = qkv[:, 0 * D:1 * D]
        k = qkv[:, 1 * D:2 * D]
        v = qkv[:, 2 * D:3 * D]

        # Expand q to (ROWS, D): row r = query token tok(r), masked to head
        # hd(r)'s columns.  One matmul + one mask multiply for all heads/batches.
        q_exp = jnp.dot(expand, _bf16(q),
                        preferred_element_type=jnp.float32) * head_mask

        # Scores for every (batch, head, query) row against every token key;
        # cross-batch entries masked to -inf.  Softmax = one max + one sum
        # reduce over the whole (ROWS, TOKENS) block.
        s = (jnp.dot(_bf16(q_exp), _bf16(k.T),
                     preferred_element_type=jnp.float32) * ATT_SCALE
             + attn_bias)
        m = jnp.max(s, axis=-1, keepdims=True)
        e = jnp.exp(s - m)
        p = e * pl.reciprocal(jnp.sum(e, axis=-1, keepdims=True), approx=True)

        # Per-row context over all feature columns, keep each row's own head
        # columns, then fold the head-stacked rows back to (TOKENS, D).
        ctx_rows = jnp.dot(_bf16(p), _bf16(v),
                           preferred_element_type=jnp.float32) * head_mask
        ctx = jnp.dot(expand_t, _bf16(ctx_rows),
                      preferred_element_type=jnp.float32)

        attn_out = (jnp.dot(_bf16(ctx), wo_ref[l],
                            preferred_element_type=jnp.float32) + bo_ref[l])
        h = h + attn_out                                  # residual 1

        # ---- MLP ----
        ln2 = ln2_ref[l]
        y = _layernorm(h, ln2[0:1, :], ln2[1:2, :])
        z = (jnp.dot(_bf16(y), w1_ref[l],
                     preferred_element_type=jnp.float32) + b1_ref[l])
        z = _gelu(z)
        z = (jnp.dot(_bf16(z), w2_ref[l],
                     preferred_element_type=jnp.float32) + b2_ref[l])
        h = h + z                                         # residual 2

    # --- final layernorm, single full-slab store ---
    o_ref[...] = _layernorm(h, lnf_g_ref[...], lnf_b_ref[...])


def fused_vit(patches, tok_bias, params):
    return pl.pallas_call(
        _fused_vit_kernel,
        out_shape=jax.ShapeDtypeStruct((TOKENS, HIDDEN), jnp.float32),
    )(patches, params["w_pe"], tok_bias,
      params["expand"], params["expand_t"], params["head_mask"],
      params["attn_bias"],
      params["ln1"], params["wqkv"], params["bqkv"], params["wo"], params["bo"],
      params["ln2"], params["w1"], params["b1"], params["w2"], params["b2"],
      params["ln_f_g"], params["ln_f_b"])


# ---------------------------------------------------------------------------
# Constant attention-structure matrices (row-gather, head masks, batch masks)
# ---------------------------------------------------------------------------
def _attention_constants():
    r = jnp.arange(ROWS)
    r_b = r // (NUM_HEADS * SEQ)                 # batch of expanded row
    r_h = (r % (NUM_HEADS * SEQ)) // SEQ         # head of expanded row
    r_s = r % SEQ                                # query position of expanded row
    r_tok = r_b * SEQ + r_s                      # source token row
    tok = jnp.arange(TOKENS)

    expand = (r_tok[:, None] == tok[None, :]).astype(jnp.bfloat16)       # (40,10)
    col = jnp.arange(HIDDEN)
    head_mask = ((col[None, :] // HEAD_DIM)
                 == r_h[:, None]).astype(jnp.float32)                    # (40,32)
    same_batch = (r_b[:, None] == (tok // SEQ)[None, :])
    attn_bias = jnp.where(same_batch, 0.0, NEG_INF).astype(jnp.float32)  # (40,10)

    return {"expand": expand, "expand_t": expand.T,
            "head_mask": head_mask, "attn_bias": attn_bias}


# ---------------------------------------------------------------------------
# Parameter construction (deterministic, synthetic; per-layer weights stacked;
# all MXU weight operands stored in bf16, accumulation stays f32)
# ---------------------------------------------------------------------------
def init_params(key):
    def nrm(k, shape, scale=0.02):
        return (scale * jax.random.normal(k, shape)).astype(jnp.float32)

    keys = jax.random.split(key, 3 + NUM_LAYERS)
    ln_pair = jnp.stack(
        [jnp.ones((HIDDEN,), jnp.float32), jnp.zeros((HIDDEN,), jnp.float32)],
        axis=0)                                          # (2, D): gamma; beta

    wqkv, wo, w1, w2 = [], [], [], []
    for li in range(NUM_LAYERS):
        lk = jax.random.split(keys[3 + li], 4)
        wqkv.append(nrm(lk[0], (HIDDEN, 3 * HIDDEN)))    # q,k,v packed on out-dim
        wo.append(nrm(lk[1], (HIDDEN, HIDDEN)))
        w1.append(nrm(lk[2], (HIDDEN, MLP_DIM)))
        w2.append(nrm(lk[3], (MLP_DIM, HIDDEN)))

    params = {
        "w_pe": nrm(keys[0], (CPP, HIDDEN)).astype(jnp.bfloat16),
        "b_pe": jnp.zeros((1, HIDDEN), jnp.float32),
        "cls": nrm(keys[1], (1, HIDDEN)),
        "pos": nrm(keys[2], (SEQ, HIDDEN)),
        "ln1": jnp.stack([ln_pair] * NUM_LAYERS, axis=0),            # (L, 2, D)
        "wqkv": jnp.stack(wqkv, axis=0).astype(jnp.bfloat16),        # (L, D, 3D)
        "bqkv": jnp.zeros((NUM_LAYERS, 1, 3 * HIDDEN), jnp.float32),
        "wo": jnp.stack(wo, axis=0).astype(jnp.bfloat16),            # (L, D, D)
        "bo": jnp.zeros((NUM_LAYERS, 1, HIDDEN), jnp.float32),
        "ln2": jnp.stack([ln_pair] * NUM_LAYERS, axis=0),            # (L, 2, D)
        "w1": jnp.stack(w1, axis=0).astype(jnp.bfloat16),            # (L, D, M)
        "b1": jnp.zeros((NUM_LAYERS, 1, MLP_DIM), jnp.float32),
        "w2": jnp.stack(w2, axis=0).astype(jnp.bfloat16),            # (L, M, D)
        "b2": jnp.zeros((NUM_LAYERS, 1, HIDDEN), jnp.float32),
        "ln_f_g": jnp.ones((1, HIDDEN), jnp.float32),
        "ln_f_b": jnp.zeros((1, HIDDEN), jnp.float32),
    }
    params.update(_attention_constants())
    return params


# ---------------------------------------------------------------------------
# Forward pass: patch extraction + CLS zero-padding + token bias in the
# wrapper, then one pallas_call
# ---------------------------------------------------------------------------
@jax.jit
def modified_vit_forward(x, params):
    # x: (B, C, H, W) float32, NCHW (matches PyTorch Conv2d input layout)
    B, C, H, W = x.shape
    nph, npw = H // PATCH, W // PATCH

    # Non-overlapping patches flattened in (c, p, q) order so the in-kernel
    # matmul matches Conv2d(kernel=stride=PATCH) with weight (D, C, P, P).
    patches = x.reshape(B, C, nph, PATCH, npw, PATCH)
    patches = patches.transpose(0, 2, 4, 1, 3, 5)
    patches = patches.reshape(B, nph * npw, CPP)
    # Zero row at each CLS position -> kernel's patch-embed matmul produces the
    # whole (TOKENS, D) slab in one go; CLS/pos/conv-bias folded into tok_bias.
    patches = jnp.concatenate(
        [jnp.zeros((B, 1, CPP), patches.dtype), patches], axis=1)
    patches = patches.reshape(TOKENS, CPP)

    cls_row = params["cls"] + params["pos"][0:1, :]          # (1, D)
    patch_bias = params["b_pe"] + params["pos"][1:SEQ, :]    # (N, D)
    tok_bias = jnp.tile(jnp.concatenate([cls_row, patch_bias], axis=0),
                        (B, 1))                              # (TOKENS, D)

    out = fused_vit(patches, tok_bias, params)               # (B*T, D)
    return out.reshape(B, SEQ, HIDDEN)                       # last_hidden_state


# ---------------------------------------------------------------------------
if __name__ == "__main__":
    key = jax.random.PRNGKey(0)
    k_x, k_p = jax.random.split(key)
    x = jax.random.normal(k_x, (BATCH, IN_CH, IMG, IMG), dtype=jnp.float32)
    params = init_params(k_p)

    out = modified_vit_forward(x, params)
    out = jax.block_until_ready(out)

    assert out.shape == (BATCH, SEQ, HIDDEN), out.shape
    assert jnp.all(jnp.isfinite(out))
    print("KERNEL_OK")
</pallas_src>

<mosaic_0001>
module attributes {stable_mosaic.version = 11 : i64} {
  func.func @_fused_vit_kernel(%arg0: memref<10x192xf32, #tpu.memory_space<vmem>>, %arg1: memref<192x32xbf16, #tpu.memory_space<vmem>>, %arg2: memref<10x32xf32, #tpu.memory_space<vmem>>, %arg3: memref<40x10xbf16, #tpu.memory_space<vmem>>, %arg4: memref<10x40xbf16, #tpu.memory_space<vmem>>, %arg5: memref<40x32xf32, #tpu.memory_space<vmem>>, %arg6: memref<40x10xf32, #tpu.memory_space<vmem>>, %arg7: memref<2x2x32xf32, #tpu.memory_space<vmem>>, %arg8: memref<2x32x96xbf16, #tpu.memory_space<vmem>>, %arg9: memref<2x1x96xf32, #tpu.memory_space<vmem>>, %arg10: memref<2x32x32xbf16, #tpu.memory_space<vmem>>, %arg11: memref<2x1x32xf32, #tpu.memory_space<vmem>>, %arg12: memref<2x2x32xf32, #tpu.memory_space<vmem>>, %arg13: memref<2x32x64xbf16, #tpu.memory_space<vmem>>, %arg14: memref<2x1x64xf32, #tpu.memory_space<vmem>>, %arg15: memref<2x64x32xbf16, #tpu.memory_space<vmem>>, %arg16: memref<2x1x32xf32, #tpu.memory_space<vmem>>, %arg17: memref<1x32xf32, #tpu.memory_space<vmem>>, %arg18: memref<1x32xf32, #tpu.memory_space<vmem>>, %arg19: memref<10x32xf32, #tpu.memory_space<vmem>>) attributes {dimension_semantics = [], scalar_prefetch = 0 : i64, scratch_operands = 0 : i64, tpu.core_type = #tpu.core_type<tc>} {
    %c0 = arith.constant 0 : index
    %c0_0 = arith.constant 0 : index
    %0 = vector.load %arg0[%c0, %c0_0] : memref<10x192xf32, #tpu.memory_space<vmem>>, vector<10x192xf32>
    %1 = arith.truncf %0 : vector<10x192xf32> to vector<10x192xbf16>
    %c0_1 = arith.constant 0 : index
    %c0_2 = arith.constant 0 : index
    %2 = vector.load %arg1[%c0_1, %c0_2] : memref<192x32xbf16, #tpu.memory_space<vmem>>, vector<192x32xbf16>
    %cst = arith.constant dense<0.000000e+00> : vector<10x32xf32>
    %3 = tpu.matmul %1, %2, %cst {dimension_numbers = #tpu.dot_dimension_numbers<[1], [0], [0], [1], [0, 0, 1, 1], [], []>} : vector<10x192xbf16>, vector<192x32xbf16>, vector<10x32xf32> -> vector<10x32xf32>
    %c0_3 = arith.constant 0 : index
    %c0_4 = arith.constant 0 : index
    %4 = vector.load %arg2[%c0_3, %c0_4] : memref<10x32xf32, #tpu.memory_space<vmem>>, vector<10x32xf32>
    %5 = arith.addf %3, %4 : vector<10x32xf32>
    %c0_5 = arith.constant 0 : index
    %c0_6 = arith.constant 0 : index
    %6 = vector.load %arg3[%c0_5, %c0_6] : memref<40x10xbf16, #tpu.memory_space<vmem>>, vector<40x10xbf16>
    %c0_7 = arith.constant 0 : index
    %c0_8 = arith.constant 0 : index
    %7 = vector.load %arg4[%c0_7, %c0_8] : memref<10x40xbf16, #tpu.memory_space<vmem>>, vector<10x40xbf16>
    %c0_9 = arith.constant 0 : index
    %c0_10 = arith.constant 0 : index
    %8 = vector.load %arg5[%c0_9, %c0_10] : memref<40x32xf32, #tpu.memory_space<vmem>>, vector<40x32xf32>
    %c0_11 = arith.constant 0 : index
    %c0_12 = arith.constant 0 : index
    %9 = vector.load %arg6[%c0_11, %c0_12] : memref<40x10xf32, #tpu.memory_space<vmem>>, vector<40x10xf32>
    %c0_13 = arith.constant 0 : index
    %c0_14 = arith.constant 0 : index
    %c0_15 = arith.constant 0 : index
    %10 = vector.load %arg7[%c0_13, %c0_14, %c0_15] : memref<2x2x32xf32, #tpu.memory_space<vmem>>, vector<1x2x32xf32>
    %11 = vector.shape_cast %10 : vector<1x2x32xf32> to vector<2x32xf32>
    %12 = vector.extract_strided_slice %11 {offsets = [0, 0], sizes = [1, 32], strides = [1, 1]} : vector<2x32xf32> to vector<1x32xf32>
    %13 = vector.extract_strided_slice %11 {offsets = [1, 0], sizes = [1, 32], strides = [1, 1]} : vector<2x32xf32> to vector<1x32xf32>
    %cst_16 = arith.constant dense<0.000000e+00> : vector<10xf32>
    %14 = vector.multi_reduction <add>, %5, %cst_16 [1] : vector<10x32xf32> to vector<10xf32>
    %15 = vector.shape_cast %14 : vector<10xf32> to vector<10x1xf32>
    %cst_17 = arith.constant 3.200000e+01 : f32
    %16 = vector.broadcast %cst_17 : f32 to vector<10x1xf32>
    %17 = arith.divf %15, %16 : vector<10x1xf32>
    %18 = vector.broadcast %17 : vector<10x1xf32> to vector<10x32xf32>
    %19 = arith.subf %5, %18 : vector<10x32xf32>
    %20 = arith.mulf %19, %19 : vector<10x32xf32>
    %cst_18 = arith.constant dense<0.000000e+00> : vector<10xf32>
    %21 = vector.multi_reduction <add>, %20, %cst_18 [1] : vector<10x32xf32> to vector<10xf32>
    %22 = vector.shape_cast %21 : vector<10xf32> to vector<10x1xf32>
    %cst_19 = arith.constant 3.200000e+01 : f32
    %23 = vector.broadcast %cst_19 : f32 to vector<10x1xf32>
    %24 = arith.divf %22, %23 : vector<10x1xf32>
    %cst_20 = arith.constant 9.99999996E-13 : f32
    %25 = vector.broadcast %cst_20 : f32 to vector<10x1xf32>
    %26 = arith.addf %24, %25 : vector<10x1xf32>
    %27 = math.rsqrt %26 : vector<10x1xf32>
    %28 = vector.broadcast %27 : vector<10x1xf32> to vector<10x32xf32>
    %29 = arith.mulf %19, %28 : vector<10x32xf32>
    %30 = vector.broadcast %12 : vector<1x32xf32> to vector<10x32xf32>
    %31 = arith.mulf %29, %30 : vector<10x32xf32>
    %32 = vector.broadcast %13 : vector<1x32xf32> to vector<10x32xf32>
    %33 = arith.addf %31, %32 : vector<10x32xf32>
    %34 = arith.truncf %33 : vector<10x32xf32> to vector<10x32xbf16>
    %c0_21 = arith.constant 0 : index
    %c0_22 = arith.constant 0 : index
    %c0_23 = arith.constant 0 : index
    %35 = vector.load %arg8[%c0_21, %c0_22, %c0_23] : memref<2x32x96xbf16, #tpu.memory_space<vmem>>, vector<1x32x96xbf16>
    %36 = vector.shape_cast %35 : vector<1x32x96xbf16> to vector<32x96xbf16>
    %cst_24 = arith.constant dense<0.000000e+00> : vector<10x96xf32>
    %37 = tpu.matmul %34, %36, %cst_24 {dimension_numbers = #tpu.dot_dimension_numbers<[1], [0], [0], [1], [0, 0, 1, 1], [], []>} : vector<10x32xbf16>, vector<32x96xbf16>, vector<10x96xf32> -> vector<10x96xf32>
    %c0_25 = arith.constant 0 : index
    %c0_26 = arith.constant 0 : index
    %c0_27 = arith.constant 0 : index
    %38 = vector.load %arg9[%c0_25, %c0_26, %c0_27] : memref<2x1x96xf32, #tpu.memory_space<vmem>>, vector<1x1x96xf32>
    %39 = vector.shape_cast %38 : vector<1x1x96xf32> to vector<1x96xf32>
    %40 = vector.broadcast %39 : vector<1x96xf32> to vector<10x96xf32>
    %41 = arith.addf %37, %40 : vector<10x96xf32>
    %42 = vector.extract_strided_slice %41 {offsets = [0, 0], sizes = [10, 32], strides = [1, 1]} : vector<10x96xf32> to vector<10x32xf32>
    %43 = vector.extract_strided_slice %41 {offsets = [0, 32], sizes = [10, 32], strides = [1, 1]} : vector<10x96xf32> to vector<10x32xf32>
    %44 = vector.extract_strided_slice %41 {offsets = [0, 64], sizes = [10, 32], strides = [1, 1]} : vector<10x96xf32> to vector<10x32xf32>
    %45 = arith.truncf %42 : vector<10x32xf32> to vector<10x32xbf16>
    %cst_28 = arith.constant dense<0.000000e+00> : vector<40x32xf32>
    %46 = tpu.matmul %6, %45, %cst_28 {dimension_numbers = #tpu.dot_dimension_numbers<[1], [0], [0], [1], [0, 0, 1, 1], [], []>} : vector<40x10xbf16>, vector<10x32xbf16>, vector<40x32xf32> -> vector<40x32xf32>
    %47 = arith.mulf %46, %8 : vector<40x32xf32>
    %48 = arith.truncf %47 : vector<40x32xf32> to vector<40x32xbf16>
    %49 = tpu.transpose %43, [1, 0] : vector<10x32xf32> -> vector<32x10xf32>
    %50 = arith.truncf %49 : vector<32x10xf32> to vector<32x10xbf16>
    %cst_29 = arith.constant dense<0.000000e+00> : vector<40x10xf32>
    %51 = tpu.matmul %48, %50, %cst_29 {dimension_numbers = #tpu.dot_dimension_numbers<[1], [0], [0], [1], [0, 0, 1, 1], [], []>} : vector<40x32xbf16>, vector<32x10xbf16>, vector<40x10xf32> -> vector<40x10xf32>
    %cst_30 = arith.constant 0.353553385 : f32
    %52 = vector.broadcast %cst_30 : f32 to vector<40x10xf32>
    %53 = arith.mulf %51, %52 : vector<40x10xf32>
    %54 = arith.addf %53, %9 : vector<40x10xf32>
    %cst_31 = arith.constant dense<0xFF800000> : vector<40xf32>
    %55 = vector.multi_reduction <maximumf>, %54, %cst_31 [1] : vector<40x10xf32> to vector<40xf32>
    %56 = vector.shape_cast %55 : vector<40xf32> to vector<40x1xf32>
    %57 = vector.broadcast %56 : vector<40x1xf32> to vector<40x10xf32>
    %58 = arith.subf %54, %57 : vector<40x10xf32>
    %59 = math.exp %58 : vector<40x10xf32>
    %cst_32 = arith.constant dense<0.000000e+00> : vector<40xf32>
    %60 = vector.multi_reduction <add>, %59, %cst_32 [1] : vector<40x10xf32> to vector<40xf32>
    %61 = vector.shape_cast %60 : vector<40xf32> to vector<40x1xf32>
    %62 = tpu.reciprocal %61 {approx = true} : vector<40x1xf32> -> vector<40x1xf32>
    %63 = vector.broadcast %62 : vector<40x1xf32> to vector<40x10xf32>
    %64 = arith.mulf %59, %63 : vector<40x10xf32>
    %65 = arith.truncf %64 : vector<40x10xf32> to vector<40x10xbf16>
    %66 = arith.truncf %44 : vector<10x32xf32> to vector<10x32xbf16>
    %cst_33 = arith.constant dense<0.000000e+00> : vector<40x32xf32>
    %67 = tpu.matmul %65, %66, %cst_33 {dimension_numbers = #tpu.dot_dimension_numbers<[1], [0], [0], [1], [0, 0, 1, 1], [], []>} : vector<40x10xbf16>, vector<10x32xbf16>, vector<40x32xf32> -> vector<40x32xf32>
    %68 = arith.mulf %67, %8 : vector<40x32xf32>
    %69 = arith.truncf %68 : vector<40x32xf32> to vector<40x32xbf16>
    %cst_34 = arith.constant dense<0.000000e+00> : vector<10x32xf32>
    %70 = tpu.matmul %7, %69, %cst_34 {dimension_numbers = #tpu.dot_dimension_numbers<[1], [0], [0], [1], [0, 0, 1, 1], [], []>} : vector<10x40xbf16>, vector<40x32xbf16>, vector<10x32xf32> -> vector<10x32xf32>
    %71 = arith.truncf %70 : vector<10x32xf32> to vector<10x32xbf16>
    %c0_35 = arith.constant 0 : index
    %c0_36 = arith.constant 0 : index
    %c0_37 = arith.constant 0 : index
    %72 = vector.load %arg10[%c0_35, %c0_36, %c0_37] : memref<2x32x32xbf16, #tpu.memory_space<vmem>>, vector<1x32x32xbf16>
    %73 = vector.shape_cast %72 : vector<1x32x32xbf16> to vector<32x32xbf16>
    %cst_38 = arith.constant dense<0.000000e+00> : vector<10x32xf32>
    %74 = tpu.matmul %71, %73, %cst_38 {dimension_numbers = #tpu.dot_dimension_numbers<[1], [0], [0], [1], [0, 0, 1, 1], [], []>} : vector<10x32xbf16>, vector<32x32xbf16>, vector<10x32xf32> -> vector<10x32xf32>
    %c0_39 = arith.constant 0 : index
    %c0_40 = arith.constant 0 : index
    %c0_41 = arith.constant 0 : index
    %75 = vector.load %arg11[%c0_39, %c0_40, %c0_41] : memref<2x1x32xf32, #tpu.memory_space<vmem>>, vector<1x1x32xf32>
    %76 = vector.shape_cast %75 : vector<1x1x32xf32> to vector<1x32xf32>
    %77 = vector.broadcast %76 : vector<1x32xf32> to vector<10x32xf32>
    %78 = arith.addf %74, %77 : vector<10x32xf32>
    %79 = arith.addf %5, %78 : vector<10x32xf32>
    %c0_42 = arith.constant 0 : index
    %c0_43 = arith.constant 0 : index
    %c0_44 = arith.constant 0 : index
    %80 = vector.load %arg12[%c0_42, %c0_43, %c0_44] : memref<2x2x32xf32, #tpu.memory_space<vmem>>, vector<1x2x32xf32>
    %81 = vector.shape_cast %80 : vector<1x2x32xf32> to vector<2x32xf32>
    %82 = vector.extract_strided_slice %81 {offsets = [0, 0], sizes = [1, 32], strides = [1, 1]} : vector<2x32xf32> to vector<1x32xf32>
    %83 = vector.extract_strided_slice %81 {offsets = [1, 0], sizes = [1, 32], strides = [1, 1]} : vector<2x32xf32> to vector<1x32xf32>
    %cst_45 = arith.constant dense<0.000000e+00> : vector<10xf32>
    %84 = vector.multi_reduction <add>, %79, %cst_45 [1] : vector<10x32xf32> to vector<10xf32>
    %85 = vector.shape_cast %84 : vector<10xf32> to vector<10x1xf32>
    %cst_46 = arith.constant 3.200000e+01 : f32
    %86 = vector.broadcast %cst_46 : f32 to vector<10x1xf32>
    %87 = arith.divf %85, %86 : vector<10x1xf32>
    %88 = vector.broadcast %87 : vector<10x1xf32> to vector<10x32xf32>
    %89 = arith.subf %79, %88 : vector<10x32xf32>
    %90 = arith.mulf %89, %89 : vector<10x32xf32>
    %cst_47 = arith.constant dense<0.000000e+00> : vector<10xf32>
    %91 = vector.multi_reduction <add>, %90, %cst_47 [1] : vector<10x32xf32> to vector<10xf32>
    %92 = vector.shape_cast %91 : vector<10xf32> to vector<10x1xf32>
    %cst_48 = arith.constant 3.200000e+01 : f32
    %93 = vector.broadcast %cst_48 : f32 to vector<10x1xf32>
    %94 = arith.divf %92, %93 : vector<10x1xf32>
    %cst_49 = arith.constant 9.99999996E-13 : f32
    %95 = vector.broadcast %cst_49 : f32 to vector<10x1xf32>
    %96 = arith.addf %94, %95 : vector<10x1xf32>
    %97 = math.rsqrt %96 : vector<10x1xf32>
    %98 = vector.broadcast %97 : vector<10x1xf32> to vector<10x32xf32>
    %99 = arith.mulf %89, %98 : vector<10x32xf32>
    %100 = vector.broadcast %82 : vector<1x32xf32> to vector<10x32xf32>
    %101 = arith.mulf %99, %100 : vector<10x32xf32>
    %102 = vector.broadcast %83 : vector<1x32xf32> to vector<10x32xf32>
    %103 = arith.addf %101, %102 : vector<10x32xf32>
    %104 = arith.truncf %103 : vector<10x32xf32> to vector<10x32xbf16>
    %c0_50 = arith.constant 0 : index
    %c0_51 = arith.constant 0 : index
    %c0_52 = arith.constant 0 : index
    %105 = vector.load %arg13[%c0_50, %c0_51, %c0_52] : memref<2x32x64xbf16, #tpu.memory_space<vmem>>, vector<1x32x64xbf16>
    %106 = vector.shape_cast %105 : vector<1x32x64xbf16> to vector<32x64xbf16>
    %cst_53 = arith.constant dense<0.000000e+00> : vector<10x64xf32>
    %107 = tpu.matmul %104, %106, %cst_53 {dimension_numbers = #tpu.dot_dimension_numbers<[1], [0], [0], [1], [0, 0, 1, 1], [], []>} : vector<10x32xbf16>, vector<32x64xbf16>, vector<10x64xf32> -> vector<10x64xf32>
    %c0_54 = arith.constant 0 : index
    %c0_55 = arith.constant 0 : index
    %c0_56 = arith.constant 0 : index
    %108 = vector.load %arg14[%c0_54, %c0_55, %c0_56] : memref<2x1x64xf32, #tpu.memory_space<vmem>>, vector<1x1x64xf32>
    %109 = vector.shape_cast %108 : vector<1x1x64xf32> to vector<1x64xf32>
    %110 = vector.broadcast %109 : vector<1x64xf32> to vector<10x64xf32>
    %111 = arith.addf %107, %110 : vector<10x64xf32>
    %cst_57 = arith.constant 5.000000e-01 : f32
    %112 = vector.broadcast %cst_57 : f32 to vector<10x64xf32>
    %113 = arith.mulf %112, %111 : vector<10x64xf32>
    %cst_58 = arith.constant 4.471500e-02 : f32
    %114 = vector.broadcast %cst_58 : f32 to vector<10x64xf32>
    %115 = arith.mulf %114, %111 : vector<10x64xf32>
    %116 = arith.mulf %115, %111 : vector<10x64xf32>
    %117 = arith.mulf %116, %111 : vector<10x64xf32>
    %118 = arith.addf %111, %117 : vector<10x64xf32>
    %cst_59 = arith.constant 0.797884583 : f32
    %119 = vector.broadcast %cst_59 : f32 to vector<10x64xf32>
    %120 = arith.mulf %119, %118 : vector<10x64xf32>
    %121 = math.tanh %120 : vector<10x64xf32>
    %cst_60 = arith.constant 1.000000e+00 : f32
    %122 = vector.broadcast %cst_60 : f32 to vector<10x64xf32>
    %123 = arith.addf %122, %121 : vector<10x64xf32>
    %124 = arith.mulf %113, %123 : vector<10x64xf32>
    %125 = arith.truncf %124 : vector<10x64xf32> to vector<10x64xbf16>
    %c0_61 = arith.constant 0 : index
    %c0_62 = arith.constant 0 : index
    %c0_63 = arith.constant 0 : index
    %126 = vector.load %arg15[%c0_61, %c0_62, %c0_63] : memref<2x64x32xbf16, #tpu.memory_space<vmem>>, vector<1x64x32xbf16>
    %127 = vector.shape_cast %126 : vector<1x64x32xbf16> to vector<64x32xbf16>
    %cst_64 = arith.constant dense<0.000000e+00> : vector<10x32xf32>
    %128 = tpu.matmul %125, %127, %cst_64 {dimension_numbers = #tpu.dot_dimension_numbers<[1], [0], [0], [1], [0, 0, 1, 1], [], []>} : vector<10x64xbf16>, vector<64x32xbf16>, vector<10x32xf32> -> vector<10x32xf32>
    %c0_65 = arith.constant 0 : index
    %c0_66 = arith.constant 0 : index
    %c0_67 = arith.constant 0 : index
    %129 = vector.load %arg16[%c0_65, %c0_66, %c0_67] : memref<2x1x32xf32, #tpu.memory_space<vmem>>, vector<1x1x32xf32>
    %130 = vector.shape_cast %129 : vector<1x1x32xf32> to vector<1x32xf32>
    %131 = vector.broadcast %130 : vector<1x32xf32> to vector<10x32xf32>
    %132 = arith.addf %128, %131 : vector<10x32xf32>
    %133 = arith.addf %79, %132 : vector<10x32xf32>
    %c1 = arith.constant 1 : index
    %c0_68 = arith.constant 0 : index
    %c0_69 = arith.constant 0 : index
    %134 = vector.load %arg7[%c1, %c0_68, %c0_69] : memref<2x2x32xf32, #tpu.memory_space<vmem>>, vector<1x2x32xf32>
    %135 = vector.shape_cast %134 : vector<1x2x32xf32> to vector<2x32xf32>
    %136 = vector.extract_strided_slice %135 {offsets = [0, 0], sizes = [1, 32], strides = [1, 1]} : vector<2x32xf32> to vector<1x32xf32>
    %137 = vector.extract_strided_slice %135 {offsets = [1, 0], sizes = [1, 32], strides = [1, 1]} : vector<2x32xf32> to vector<1x32xf32>
    %cst_70 = arith.constant dense<0.000000e+00> : vector<10xf32>
    %138 = vector.multi_reduction <add>, %133, %cst_70 [1] : vector<10x32xf32> to vector<10xf32>
    %139 = vector.shape_cast %138 : vector<10xf32> to vector<10x1xf32>
    %cst_71 = arith.constant 3.200000e+01 : f32
    %140 = vector.broadcast %cst_71 : f32 to vector<10x1xf32>
    %141 = arith.divf %139, %140 : vector<10x1xf32>
    %142 = vector.broadcast %141 : vector<10x1xf32> to vector<10x32xf32>
    %143 = arith.subf %133, %142 : vector<10x32xf32>
    %144 = arith.mulf %143, %143 : vector<10x32xf32>
    %cst_72 = arith.constant dense<0.000000e+00> : vector<10xf32>
    %145 = vector.multi_reduction <add>, %144, %cst_72 [1] : vector<10x32xf32> to vector<10xf32>
    %146 = vector.shape_cast %145 : vector<10xf32> to vector<10x1xf32>
    %cst_73 = arith.constant 3.200000e+01 : f32
    %147 = vector.broadcast %cst_73 : f32 to vector<10x1xf32>
    %148 = arith.divf %146, %147 : vector<10x1xf32>
    %cst_74 = arith.constant 9.99999996E-13 : f32
    %149 = vector.broadcast %cst_74 : f32 to vector<10x1xf32>
    %150 = arith.addf %148, %149 : vector<10x1xf32>
    %151 = math.rsqrt %150 : vector<10x1xf32>
    %152 = vector.broadcast %151 : vector<10x1xf32> to vector<10x32xf32>
    %153 = arith.mulf %143, %152 : vector<10x32xf32>
    %154 = vector.broadcast %136 : vector<1x32xf32> to vector<10x32xf32>
    %155 = arith.mulf %153, %154 : vector<10x32xf32>
    %156 = vector.broadcast %137 : vector<1x32xf32> to vector<10x32xf32>
    %157 = arith.addf %155, %156 : vector<10x32xf32>
    %158 = arith.truncf %157 : vector<10x32xf32> to vector<10x32xbf16>
    %c1_75 = arith.constant 1 : index
    %c0_76 = arith.constant 0 : index
    %c0_77 = arith.constant 0 : index
    %159 = vector.load %arg8[%c1_75, %c0_76, %c0_77] : memref<2x32x96xbf16, #tpu.memory_space<vmem>>, vector<1x32x96xbf16>
    %160 = vector.shape_cast %159 : vector<1x32x96xbf16> to vector<32x96xbf16>
    %cst_78 = arith.constant dense<0.000000e+00> : vector<10x96xf32>
    %161 = tpu.matmul %158, %160, %cst_78 {dimension_numbers = #tpu.dot_dimension_numbers<[1], [0], [0], [1], [0, 0, 1, 1], [], []>} : vector<10x32xbf16>, vector<32x96xbf16>, vector<10x96xf32> -> vector<10x96xf32>
    %c1_79 = arith.constant 1 : index
    %c0_80 = arith.constant 0 : index
    %c0_81 = arith.constant 0 : index
    %162 = vector.load %arg9[%c1_79, %c0_80, %c0_81] : memref<2x1x96xf32, #tpu.memory_space<vmem>>, vector<1x1x96xf32>
    %163 = vector.shape_cast %162 : vector<1x1x96xf32> to vector<1x96xf32>
    %164 = vector.broadcast %163 : vector<1x96xf32> to vector<10x96xf32>
    %165 = arith.addf %161, %164 : vector<10x96xf32>
    %166 = vector.extract_strided_slice %165 {offsets = [0, 0], sizes = [10, 32], strides = [1, 1]} : vector<10x96xf32> to vector<10x32xf32>
    %167 = vector.extract_strided_slice %165 {offsets = [0, 32], sizes = [10, 32], strides = [1, 1]} : vector<10x96xf32> to vector<10x32xf32>
    %168 = vector.extract_strided_slice %165 {offsets = [0, 64], sizes = [10, 32], strides = [1, 1]} : vector<10x96xf32> to vector<10x32xf32>
    %169 = arith.truncf %166 : vector<10x32xf32> to vector<10x32xbf16>
    %cst_82 = arith.constant dense<0.000000e+00> : vector<40x32xf32>
    %170 = tpu.matmul %6, %169, %cst_82 {dimension_numbers = #tpu.dot_dimension_numbers<[1], [0], [0], [1], [0, 0, 1, 1], [], []>} : vector<40x10xbf16>, vector<10x32xbf16>, vector<40x32xf32> -> vector<40x32xf32>
    %171 = arith.mulf %170, %8 : vector<40x32xf32>
    %172 = arith.truncf %171 : vector<40x32xf32> to vector<40x32xbf16>
    %173 = tpu.transpose %167, [1, 0] : vector<10x32xf32> -> vector<32x10xf32>
    %174 = arith.truncf %173 : vector<32x10xf32> to vector<32x10xbf16>
    %cst_83 = arith.constant dense<0.000000e+00> : vector<40x10xf32>
    %175 = tpu.matmul %172, %174, %cst_83 {dimension_numbers = #tpu.dot_dimension_numbers<[1], [0], [0], [1], [0, 0, 1, 1], [], []>} : vector<40x32xbf16>, vector<32x10xbf16>, vector<40x10xf32> -> vector<40x10xf32>
    %cst_84 = arith.constant 0.353553385 : f32
    %176 = vector.broadcast %cst_84 : f32 to vector<40x10xf32>
    %177 = arith.mulf %175, %176 : vector<40x10xf32>
    %178 = arith.addf %177, %9 : vector<40x10xf32>
    %cst_85 = arith.constant dense<0xFF800000> : vector<40xf32>
    %179 = vector.multi_reduction <maximumf>, %178, %cst_85 [1] : vector<40x10xf32> to vector<40xf32>
    %180 = vector.shape_cast %179 : vector<40xf32> to vector<40x1xf32>
    %181 = vector.broadcast %180 : vector<40x1xf32> to vector<40x10xf32>
    %182 = arith.subf %178, %181 : vector<40x10xf32>
    %183 = math.exp %182 : vector<40x10xf32>
    %cst_86 = arith.constant dense<0.000000e+00> : vector<40xf32>
    %184 = vector.multi_reduction <add>, %183, %cst_86 [1] : vector<40x10xf32> to vector<40xf32>
    %185 = vector.shape_cast %184 : vector<40xf32> to vector<40x1xf32>
    %186 = tpu.reciprocal %185 {approx = true} : vector<40x1xf32> -> vector<40x1xf32>
    %187 = vector.broadcast %186 : vector<40x1xf32> to vector<40x10xf32>
    %188 = arith.mulf %183, %187 : vector<40x10xf32>
    %189 = arith.truncf %188 : vector<40x10xf32> to vector<40x10xbf16>
    %190 = arith.truncf %168 : vector<10x32xf32> to vector<10x32xbf16>
    %cst_87 = arith.constant dense<0.000000e+00> : vector<40x32xf32>
    %191 = tpu.matmul %189, %190, %cst_87 {dimension_numbers = #tpu.dot_dimension_numbers<[1], [0], [0], [1], [0, 0, 1, 1], [], []>} : vector<40x10xbf16>, vector<10x32xbf16>, vector<40x32xf32> -> vector<40x32xf32>
    %192 = arith.mulf %191, %8 : vector<40x32xf32>
    %193 = arith.truncf %192 : vector<40x32xf32> to vector<40x32xbf16>
    %cst_88 = arith.constant dense<0.000000e+00> : vector<10x32xf32>
    %194 = tpu.matmul %7, %193, %cst_88 {dimension_numbers = #tpu.dot_dimension_numbers<[1], [0], [0], [1], [0, 0, 1, 1], [], []>} : vector<10x40xbf16>, vector<40x32xbf16>, vector<10x32xf32> -> vector<10x32xf32>
    %195 = arith.truncf %194 : vector<10x32xf32> to vector<10x32xbf16>
    %c1_89 = arith.constant 1 : index
    %c0_90 = arith.constant 0 : index
    %c0_91 = arith.constant 0 : index
    %196 = vector.load %arg10[%c1_89, %c0_90, %c0_91] : memref<2x32x32xbf16, #tpu.memory_space<vmem>>, vector<1x32x32xbf16>
    %197 = vector.shape_cast %196 : vector<1x32x32xbf16> to vector<32x32xbf16>
    %cst_92 = arith.constant dense<0.000000e+00> : vector<10x32xf32>
    %198 = tpu.matmul %195, %197, %cst_92 {dimension_numbers = #tpu.dot_dimension_numbers<[1], [0], [0], [1], [0, 0, 1, 1], [], []>} : vector<10x32xbf16>, vector<32x32xbf16>, vector<10x32xf32> -> vector<10x32xf32>
    %c1_93 = arith.constant 1 : index
    %c0_94 = arith.constant 0 : index
    %c0_95 = arith.constant 0 : index
    %199 = vector.load %arg11[%c1_93, %c0_94, %c0_95] : memref<2x1x32xf32, #tpu.memory_space<vmem>>, vector<1x1x32xf32>
    %200 = vector.shape_cast %199 : vector<1x1x32xf32> to vector<1x32xf32>
    %201 = vector.broadcast %200 : vector<1x32xf32> to vector<10x32xf32>
    %202 = arith.addf %198, %201 : vector<10x32xf32>
    %203 = arith.addf %133, %202 : vector<10x32xf32>
    %c1_96 = arith.constant 1 : index
    %c0_97 = arith.constant 0 : index
    %c0_98 = arith.constant 0 : index
    %204 = vector.load %arg12[%c1_96, %c0_97, %c0_98] : memref<2x2x32xf32, #tpu.memory_space<vmem>>, vector<1x2x32xf32>
    %205 = vector.shape_cast %204 : vector<1x2x32xf32> to vector<2x32xf32>
    %206 = vector.extract_strided_slice %205 {offsets = [0, 0], sizes = [1, 32], strides = [1, 1]} : vector<2x32xf32> to vector<1x32xf32>
    %207 = vector.extract_strided_slice %205 {offsets = [1, 0], sizes = [1, 32], strides = [1, 1]} : vector<2x32xf32> to vector<1x32xf32>
    %cst_99 = arith.constant dense<0.000000e+00> : vector<10xf32>
    %208 = vector.multi_reduction <add>, %203, %cst_99 [1] : vector<10x32xf32> to vector<10xf32>
    %209 = vector.shape_cast %208 : vector<10xf32> to vector<10x1xf32>
    %cst_100 = arith.constant 3.200000e+01 : f32
    %210 = vector.broadcast %cst_100 : f32 to vector<10x1xf32>
    %211 = arith.divf %209, %210 : vector<10x1xf32>
    %212 = vector.broadcast %211 : vector<10x1xf32> to vector<10x32xf32>
    %213 = arith.subf %203, %212 : vector<10x32xf32>
    %214 = arith.mulf %213, %213 : vector<10x32xf32>
    %cst_101 = arith.constant dense<0.000000e+00> : vector<10xf32>
    %215 = vector.multi_reduction <add>, %214, %cst_101 [1] : vector<10x32xf32> to vector<10xf32>
    %216 = vector.shape_cast %215 : vector<10xf32> to vector<10x1xf32>
    %cst_102 = arith.constant 3.200000e+01 : f32
    %217 = vector.broadcast %cst_102 : f32 to vector<10x1xf32>
    %218 = arith.divf %216, %217 : vector<10x1xf32>
    %cst_103 = arith.constant 9.99999996E-13 : f32
    %219 = vector.broadcast %cst_103 : f32 to vector<10x1xf32>
    %220 = arith.addf %218, %219 : vector<10x1xf32>
    %221 = math.rsqrt %220 : vector<10x1xf32>
    %222 = vector.broadcast %221 : vector<10x1xf32> to vector<10x32xf32>
    %223 = arith.mulf %213, %222 : vector<10x32xf32>
    %224 = vector.broadcast %206 : vector<1x32xf32> to vector<10x32xf32>
    %225 = arith.mulf %223, %224 : vector<10x32xf32>
    %226 = vector.broadcast %207 : vector<1x32xf32> to vector<10x32xf32>
    %227 = arith.addf %225, %226 : vector<10x32xf32>
    %228 = arith.truncf %227 : vector<10x32xf32> to vector<10x32xbf16>
    %c1_104 = arith.constant 1 : index
    %c0_105 = arith.constant 0 : index
    %c0_106 = arith.constant 0 : index
    %229 = vector.load %arg13[%c1_104, %c0_105, %c0_106] : memref<2x32x64xbf16, #tpu.memory_space<vmem>>, vector<1x32x64xbf16>
    %230 = vector.shape_cast %229 : vector<1x32x64xbf16> to vector<32x64xbf16>
    %cst_107 = arith.constant dense<0.000000e+00> : vector<10x64xf32>
    %231 = tpu.matmul %228, %230, %cst_107 {dimension_numbers = #tpu.dot_dimension_numbers<[1], [0], [0], [1], [0, 0, 1, 1], [], []>} : vector<10x32xbf16>, vector<32x64xbf16>, vector<10x64xf32> -> vector<10x64xf32>
    %c1_108 = arith.constant 1 : index
    %c0_109 = arith.constant 0 : index
    %c0_110 = arith.constant 0 : index
    %232 = vector.load %arg14[%c1_108, %c0_109, %c0_110] : memref<2x1x64xf32, #tpu.memory_space<vmem>>, vector<1x1x64xf32>
    %233 = vector.shape_cast %232 : vector<1x1x64xf32> to vector<1x64xf32>
    %234 = vector.broadcast %233 : vector<1x64xf32> to vector<10x64xf32>
    %235 = arith.addf %231, %234 : vector<10x64xf32>
    %cst_111 = arith.constant 5.000000e-01 : f32
    %236 = vector.broadcast %cst_111 : f32 to vector<10x64xf32>
    %237 = arith.mulf %236, %235 : vector<10x64xf32>
    %cst_112 = arith.constant 4.471500e-02 : f32
    %238 = vector.broadcast %cst_112 : f32 to vector<10x64xf32>
    %239 = arith.mulf %238, %235 : vector<10x64xf32>
    %240 = arith.mulf %239, %235 : vector<10x64xf32>
    %241 = arith.mulf %240, %235 : vector<10x64xf32>
    %242 = arith.addf %235, %241 : vector<10x64xf32>
    %cst_113 = arith.constant 0.797884583 : f32
    %243 = vector.broadcast %cst_113 : f32 to vector<10x64xf32>
    %244 = arith.mulf %243, %242 : vector<10x64xf32>
    %245 = math.tanh %244 : vector<10x64xf32>
    %cst_114 = arith.constant 1.000000e+00 : f32
    %246 = vector.broadcast %cst_114 : f32 to vector<10x64xf32>
    %247 = arith.addf %246, %245 : vector<10x64xf32>
    %248 = arith.mulf %237, %247 : vector<10x64xf32>
    %249 = arith.truncf %248 : vector<10x64xf32> to vector<10x64xbf16>
    %c1_115 = arith.constant 1 : index
    %c0_116 = arith.constant 0 : index
    %c0_117 = arith.constant 0 : index
    %250 = vector.load %arg15[%c1_115, %c0_116, %c0_117] : memref<2x64x32xbf16, #tpu.memory_space<vmem>>, vector<1x64x32xbf16>
    %251 = vector.shape_cast %250 : vector<1x64x32xbf16> to vector<64x32xbf16>
    %cst_118 = arith.constant dense<0.000000e+00> : vector<10x32xf32>
    %252 = tpu.matmul %249, %251, %cst_118 {dimension_numbers = #tpu.dot_dimension_numbers<[1], [0], [0], [1], [0, 0, 1, 1], [], []>} : vector<10x64xbf16>, vector<64x32xbf16>, vector<10x32xf32> -> vector<10x32xf32>
    %c1_119 = arith.constant 1 : index
    %c0_120 = arith.constant 0 : index
    %c0_121 = arith.constant 0 : index
    %253 = vector.load %arg16[%c1_119, %c0_120, %c0_121] : memref<2x1x32xf32, #tpu.memory_space<vmem>>, vector<1x1x32xf32>
    %254 = vector.shape_cast %253 : vector<1x1x32xf32> to vector<1x32xf32>
    %255 = vector.broadcast %254 : vector<1x32xf32> to vector<10x32xf32>
    %256 = arith.addf %252, %255 : vector<10x32xf32>
    %257 = arith.addf %203, %256 : vector<10x32xf32>
    %c0_122 = arith.constant 0 : index
    %c0_123 = arith.constant 0 : index
    %258 = vector.load %arg17[%c0_122, %c0_123] : memref<1x32xf32, #tpu.memory_space<vmem>>, vector<1x32xf32>
    %c0_124 = arith.constant 0 : index
    %c0_125 = arith.constant 0 : index
    %259 = vector.load %arg18[%c0_124, %c0_125] : memref<1x32xf32, #tpu.memory_space<vmem>>, vector<1x32xf32>
    %cst_126 = arith.constant dense<0.000000e+00> : vector<10xf32>
    %260 = vector.multi_reduction <add>, %257, %cst_126 [1] : vector<10x32xf32> to vector<10xf32>
    %261 = vector.shape_cast %260 : vector<10xf32> to vector<10x1xf32>
    %cst_127 = arith.constant 3.200000e+01 : f32
    %262 = vector.broadcast %cst_127 : f32 to vector<10x1xf32>
    %263 = arith.divf %261, %262 : vector<10x1xf32>
    %264 = vector.broadcast %263 : vector<10x1xf32> to vector<10x32xf32>
    %265 = arith.subf %257, %264 : vector<10x32xf32>
    %266 = arith.mulf %265, %265 : vector<10x32xf32>
    %cst_128 = arith.constant dense<0.000000e+00> : vector<10xf32>
    %267 = vector.multi_reduction <add>, %266, %cst_128 [1] : vector<10x32xf32> to vector<10xf32>
    %268 = vector.shape_cast %267 : vector<10xf32> to vector<10x1xf32>
    %cst_129 = arith.constant 3.200000e+01 : f32
    %269 = vector.broadcast %cst_129 : f32 to vector<10x1xf32>
    %270 = arith.divf %268, %269 : vector<10x1xf32>
    %cst_130 = arith.constant 9.99999996E-13 : f32
    %271 = vector.broadcast %cst_130 : f32 to vector<10x1xf32>
    %272 = arith.addf %270, %271 : vector<10x1xf32>
    %273 = math.rsqrt %272 : vector<10x1xf32>
    %274 = vector.broadcast %273 : vector<10x1xf32> to vector<10x32xf32>
    %275 = arith.mulf %265, %274 : vector<10x32xf32>
    %276 = vector.broadcast %258 : vector<1x32xf32> to vector<10x32xf32>
    %277 = arith.mulf %275, %276 : vector<10x32xf32>
    %278 = vector.broadcast %259 : vector<1x32xf32> to vector<10x32xf32>
    %279 = arith.addf %277, %278 : vector<10x32xf32>
    %c0_131 = arith.constant 0 : index
    %c0_132 = arith.constant 0 : index
    %280 = vector.load %arg19[%c0_131, %c0_132] : memref<10x32xf32, #tpu.memory_space<vmem>>, vector<10x32xf32>
    tpu.vector_store %arg19[%c0_131, %c0_132], %279 {strides = array<i32>} : memref<10x32xf32, #tpu.memory_space<vmem>>, vector<10x32xf32>,
    return
  }
}

</mosaic_0001>

<llo_original>
// kernel: tile.9
$region0: #{tile.9}
  %s0 = inlined_call_operand.vmem [shape: f32[2,5,32], index: 0, kind: input, shape index: {}]
  %s1 = inlined_call_operand.vmem [shape: f32[10,32], index: 1, kind: output, shape index: {}]
  %v2 = vld [vmem:[%s0] sm:$0x1f]
  %vm3 = vcmask 261120
  %4 = vst.msk [vmem:[%s1] sm:$0x1f] %vm3, %v2
  %s5 = scalar_lea.vmem %s0, 8
  %v6 = vld [vmem:[%s5] sm:$0x1f]
  %vm7 = vcmask 261120
  %s8 = scalar_lea.vmem %s1, 5
  %9 = vst.msk [vmem:[%s8] sm:$0x1f] %vm7, %v6

// kernel: modified_vit_forward.1
$region0: #{modified_vit_forward.1}
  #allocation0 [shape = 'u32[]', space=smem, size = 0x4, offset = 0x4, fixed_abs, tag = 'smem constant byte address 0x4 - core index']
  #allocation1 [shape = 'u32[72,128]{1,0:T(1,128)}', space=vmem, size = 0x9000, scoped, tag = 'internal scratch']
  %s0 = inlined_call_operand.vmem [shape: f32[10,192], index: 0, kind: input, shape index: {}]
  %s1 = inlined_call_operand.vmem [shape: bf16[192,32], index: 1, kind: input, shape index: {}]
  %s2 = inlined_call_operand.vmem [shape: f32[10,32], index: 2, kind: input, shape index: {}]
  %s3 = inlined_call_operand.vmem [shape: bf16[40,10], index: 3, kind: input, shape index: {}]
  %s4 = inlined_call_operand.vmem [shape: bf16[10,40], index: 4, kind: input, shape index: {}]
  %s5 = inlined_call_operand.vmem [shape: f32[40,32], index: 5, kind: input, shape index: {}]
  %s6 = inlined_call_operand.vmem [shape: f32[40,10], index: 6, kind: input, shape index: {}]
  %s7 = inlined_call_operand.vmem [shape: f32[2,2,32], index: 7, kind: input, shape index: {}]
  %s8 = inlined_call_operand.vmem [shape: bf16[2,32,96], index: 8, kind: input, shape index: {}]
  %s9 = inlined_call_operand.vmem [shape: f32[2,1,96], index: 9, kind: input, shape index: {}]
  %s10 = inlined_call_operand.vmem [shape: bf16[2,32,32], index: 10, kind: input, shape index: {}]
  %s11 = inlined_call_operand.vmem [shape: f32[2,1,32], index: 11, kind: input, shape index: {}]
  %s12 = inlined_call_operand.vmem [shape: f32[2,2,32], index: 12, kind: input, shape index: {}]
  %s13 = inlined_call_operand.vmem [shape: bf16[2,32,64], index: 13, kind: input, shape index: {}]
  %s14 = inlined_call_operand.vmem [shape: f32[2,1,64], index: 14, kind: input, shape index: {}]
  %s15 = inlined_call_operand.vmem [shape: bf16[2,64,32], index: 15, kind: input, shape index: {}]
  %s16 = inlined_call_operand.vmem [shape: f32[2,1,32], index: 16, kind: input, shape index: {}]
  %s17 = inlined_call_operand.vmem [shape: f32[1,32], index: 17, kind: input, shape index: {}]
  %s18 = inlined_call_operand.vmem [shape: f32[1,32], index: 18, kind: input, shape index: {}]
  %s19 = inlined_call_operand.vmem [shape: f32[10,32], index: 19, kind: output, shape index: {}]
  %s20 = sld [smem:[#allocation0]]
  $region86: #{modified_vit_forward.1} parent=0
    _
  %s22 = ssub.s32 1, %s20
  %s23 = scalar_select 0, %s22, %s20
  // Predicated region
  $region2: #{modified_vit_forward.1} parent=0 // pred_check
    _
  $region3: #{modified_vit_forward.1} parent=0 // pred_check_branch
    %25 = sbr.rel (0) target = $region5
  $region4: #{modified_vit_forward.1} parent=0 // pred_region
    _
  $region5: #{modified_vit_forward.1} parent=0 // pred_fallthru
    _
  // Predicated region
  $region6: #{modified_vit_forward.1} parent=0 // pred_check
    _
  $region7: #{modified_vit_forward.1} parent=0 // pred_check_branch
    %27 = sbr.rel (0) target = $region9
  $region8: #{modified_vit_forward.1} parent=0 // pred_region
    _
  $region9: #{modified_vit_forward.1} parent=0 // pred_fallthru
    _
  // Predicated region
  $region10: #{modified_vit_forward.1} parent=0 // pred_check
    _
  $region11: #{modified_vit_forward.1} parent=0 // pred_check_branch
    %29 = sbr.rel (0) target = $region13
  $region12: #{modified_vit_forward.1} parent=0 // pred_region
    _
  $region13: #{modified_vit_forward.1} parent=0 // pred_fallthru
    _
  // Predicated region
  $region14: #{modified_vit_forward.1} parent=0 // pred_check
    _
  $region15: #{modified_vit_forward.1} parent=0 // pred_check_branch
    %31 = sbr.rel (0) target = $region17
  $region16: #{modified_vit_forward.1} parent=0 // pred_region
    _
  $region17: #{modified_vit_forward.1} parent=0 // pred_fallthru
    _
  // Predicated region
  $region18: #{modified_vit_forward.1} parent=0 // pred_check
    _
  $region19: #{modified_vit_forward.1} parent=0 // pred_check_branch
    %33 = sbr.rel (0) target = $region21
  $region20: #{modified_vit_forward.1} parent=0 // pred_region
    _
  $region21: #{modified_vit_forward.1} parent=0 // pred_fallthru
    _
  // Predicated region
  $region22: #{modified_vit_forward.1} parent=0 // pred_check
    _
  $region23: #{modified_vit_forward.1} parent=0 // pred_check_branch
    %35 = sbr.rel (0) target = $region25
  $region24: #{modified_vit_forward.1} parent=0 // pred_region
    _
  $region25: #{modified_vit_forward.1} parent=0 // pred_fallthru
    _
  // Predicated region
  $region26: #{modified_vit_forward.1} parent=0 // pred_check
    _
  $region27: #{modified_vit_forward.1} parent=0 // pred_check_branch
    %37 = sbr.rel (0) target = $region29
  $region28: #{modified_vit_forward.1} parent=0 // pred_region
    _
  $region29: #{modified_vit_forward.1} parent=0 // pred_fallthru
    _
  // Predicated region
  $region30: #{modified_vit_forward.1} parent=0 // pred_check
    _
  $region31: #{modified_vit_forward.1} parent=0 // pred_check_branch
    %39 = sbr.rel (0) target = $region33
  $region32: #{modified_vit_forward.1} parent=0 // pred_region
    _
  $region33: #{modified_vit_forward.1} parent=0 // pred_fallthru
    _
  // Predicated region
  $region34: #{modified_vit_forward.1} parent=0 // pred_check
    _
  $region35: #{modified_vit_forward.1} parent=0 // pred_check_branch
    %41 = sbr.rel (0) target = $region37
  $region36: #{modified_vit_forward.1} parent=0 // pred_region
    _
  $region37: #{modified_vit_forward.1} parent=0 // pred_fallthru
    _
  // Predicated region
  $region38: #{modified_vit_forward.1} parent=0 // pred_check
    _
  $region39: #{modified_vit_forward.1} parent=0 // pred_check_branch
    %43 = sbr.rel (0) target = $region41
  $region40: #{modified_vit_forward.1} parent=0 // pred_region
    _
  $region41: #{modified_vit_forward.1} parent=0 // pred_fallthru
    _
  // Predicated region
  $region42: #{modified_vit_forward.1} parent=0 // pred_check
    _
  $region43: #{modified_vit_forward.1} parent=0 // pred_check_branch
    %45 = sbr.rel (0) target = $region45
  $region44: #{modified_vit_forward.1} parent=0 // pred_region
    _
  $region45: #{modified_vit_forward.1} parent=0 // pred_fallthru
    _
  // Predicated region
  $region46: #{modified_vit_forward.1} parent=0 // pred_check
    _
  $region47: #{modified_vit_forward.1} parent=0 // pred_check_branch
    %47 = sbr.rel (0) target = $region49
  $region48: #{modified_vit_forward.1} parent=0 // pred_region
    _
  $region49: #{modified_vit_forward.1} parent=0 // pred_fallthru
    _
  // Predicated region
  $region50: #{modified_vit_forward.1} parent=0 // pred_check
    _
  $region51: #{modified_vit_forward.1} parent=0 // pred_check_branch
    %49 = sbr.rel (0) target = $region53
  $region52: #{modified_vit_forward.1} parent=0 // pred_region
    _
  $region53: #{modified_vit_forward.1} parent=0 // pred_fallthru
    _
  // Predicated region
  $region54: #{modified_vit_forward.1} parent=0 // pred_check
    _
  $region55: #{modified_vit_forward.1} parent=0 // pred_check_branch
    %51 = sbr.rel (0) target = $region57
  $region56: #{modified_vit_forward.1} parent=0 // pred_region
    _
  $region57: #{modified_vit_forward.1} parent=0 // pred_fallthru
    _
  // Predicated region
  $region58: #{modified_vit_forward.1} parent=0 // pred_check
    _
  $region59: #{modified_vit_forward.1} parent=0 // pred_check_branch
    %53 = sbr.rel (0) target = $region61
  $region60: #{modified_vit_forward.1} parent=0 // pred_region
    _
  $region61: #{modified_vit_forward.1} parent=0 // pred_fallthru
    _
  // Predicated region
  $region62: #{modified_vit_forward.1} parent=0 // pred_check
    _
  $region63: #{modified_vit_forward.1} parent=0 // pred_check_branch
    %55 = sbr.rel (0) target = $region65
  $region64: #{modified_vit_forward.1} parent=0 // pred_region
    _
  $region65: #{modified_vit_forward.1} parent=0 // pred_fallthru
    _
  // Predicated region
  $region66: #{modified_vit_forward.1} parent=0 // pred_check
    _
  $region67: #{modified_vit_forward.1} parent=0 // pred_check_branch
    %57 = sbr.rel (0) target = $region69
  $region68: #{modified_vit_forward.1} parent=0 // pred_region
    _
  $region69: #{modified_vit_forward.1} parent=0 // pred_fallthru
    _
  // Predicated region
  $region70: #{modified_vit_forward.1} parent=0 // pred_check
    _
  $region71: #{modified_vit_forward.1} parent=0 // pred_check_branch
    %59 = sbr.rel (0) target = $region73
  $region72: #{modified_vit_forward.1} parent=0 // pred_region
    _
  $region73: #{modified_vit_forward.1} parent=0 // pred_fallthru
    _
  // Predicated region
  $region74: #{modified_vit_forward.1} parent=0 // pred_check
    _
  $region75: #{modified_vit_forward.1} parent=0 // pred_check_branch
    %61 = sbr.rel (0) target = $region77
  $region76: #{modified_vit_forward.1} parent=0 // pred_region
    _
  $region77: #{modified_vit_forward.1} parent=0 // pred_fallthru
    _
  %v63 = vld [vmem:[%s0] sm:$0xff]
  %v64 = vld [vmem:[%s0 + $0x8] sm:$0xff]
  %v65 = vld [vmem:[%s0 + $0x10] sm:$0x3]
  %v66 = vld [vmem:[%s0 + $0x18] sm:$0x3]
  %v67 = vpack.c.bf16 %v65, %v63
  %v68 = vpack.c.bf16 %v66, %v64
  %v69 = vld [vmem:[%s1] sm:$0xf]
  %v70 = vld [vmem:[%s1 + $0x4] sm:$0xf]
  %v71 = vld [vmem:[%s1 + $0x8] sm:$0xf]
  %v72 = vld [vmem:[%s1 + $0xc] sm:$0xf]
  %v73 = vld [vmem:[%s1 + $0x10] sm:$0xf]
  %v74 = vld [vmem:[%s1 + $0x14] sm:$0xf]
  %v75 = vld [vmem:[%s1 + $0x18] sm:$0xf]
  %v76 = vld [vmem:[%s1 + $0x1c] sm:$0xf]
  %v77 = vld [vmem:[%s1 + $0x20] sm:$0xf]
  %v78 = vld [vmem:[%s1 + $0x24] sm:$0xf]
  %v79 = vld [vmem:[%s1 + $0x28] sm:$0xf]
  %v80 = vld [vmem:[%s1 + $0x2c] sm:$0xf]
  %v81 = vld [vmem:[%s1 + $0x30] sm:$0xf]
  %v82 = vld [vmem:[%s1 + $0x34] sm:$0xf]
  %v83 = vld [vmem:[%s1 + $0x38] sm:$0xf]
  %v84 = vld [vmem:[%s1 + $0x3c] sm:$0xf]
  %v85 = vld [vmem:[%s1 + $0x40] sm:$0xf]
  %v86 = vld [vmem:[%s1 + $0x44] sm:$0xf]
  %v87 = vld [vmem:[%s1 + $0x48] sm:$0xf]
  %v88 = vld [vmem:[%s1 + $0x4c] sm:$0xf]
  %v89 = vld [vmem:[%s1 + $0x50] sm:$0xf]
  %v90 = vld [vmem:[%s1 + $0x54] sm:$0xf]
  %v91 = vld [vmem:[%s1 + $0x58] sm:$0xf]
  %v92 = vld [vmem:[%s1 + $0x5c] sm:$0xf]
  %v93 = vld [vmem:[%s2] sm:$0xff]
  %v94 = vld [vmem:[%s2 + $0x8] sm:$0x3]
  %v119 = vunpack.c.l.b16 %v69
  %v120 = vunpack.c.l.b16 %v70
  %v121 = vunpack.c.l.b16 %v71
  %v122 = vunpack.c.l.b16 %v72
  %v123 = vunpack.c.l.b16 %v73
  %v124 = vunpack.c.l.b16 %v74
  %v125 = vunpack.c.l.b16 %v75
  %v126 = vunpack.c.l.b16 %v76
  %v127 = vunpack.c.l.b16 %v77
  %v128 = vunpack.c.l.b16 %v78
  %v129 = vunpack.c.l.b16 %v79
  %v130 = vunpack.c.l.b16 %v80
  %v131 = vunpack.c.l.b16 %v81
  %v132 = vunpack.c.l.b16 %v82
  %v133 = vunpack.c.l.b16 %v83
  %v134 = vunpack.c.l.b16 %v84
  %v135 = vunpack.c.l.b16 %v85
  %v136 = vunpack.c.l.b16 %v86
  %v137 = vunpack.c.l.b16 %v87
  %v138 = vunpack.c.l.b16 %v88
  %v139 = vunpack.c.l.b16 %v89
  %v140 = vunpack.c.l.b16 %v90
  %v141 = vunpack.c.l.b16 %v91
  %v142 = vunpack.c.l.b16 %v92
  %v143 = vpack.c.b16 %v120, %v119
  %v144 = vpack.c.b16 %v122, %v121
  %v145 = vpack.c.b16 %v124, %v123
  %v146 = vpack.c.b16 %v126, %v125
  %v147 = vpack.c.b16 %v128, %v127
  %v148 = vpack.c.b16 %v130, %v129
  %v149 = vpack.c.b16 %v132, %v131
  %v150 = vpack.c.b16 %v134, %v133
  %v151 = vpack.c.b16 %v136, %v135
  %v152 = vpack.c.b16 %v138, %v137
  %v153 = vpack.c.b16 %v140, %v139
  %v154 = vpack.c.b16 %v142, %v141
  %vm167 = vcmask 523264
  %v169 = vsel %vm167, %v68, 0
  %171 = vmatpush.bf16.msra.mxu0 %v150
  %172 = vmatpush.bf16.msra.mxu0 %v149
  %173 = vmatpush.bf16.msra.mxu0 %v148
  %174 = vmatpush.bf16.msra.mxu0 %v147
  %175 = vmatpush.bf16.msra.mxu0 %v146
  %176 = vmatpush.bf16.msra.mxu0 %v145
  %177 = vmatpush.bf16.msra.mxu0 %v144
  %178 = vmatpush.bf16.msra.mxu0 %v143
  %179 = vmatmul.bf16.gmra.mxu0 %v67
  %v180 = vpop.f32.mrf.mxu0
  %v181 = vadd.f32 %v93, %v180
  %v182 = vpop.f32.mrf.mxu0
  %v183 = vadd.f32 %v94, %v182
  %184 = vdwg.mxu0
  %185 = vmatpush.bf16.msra.mxu0 0
  %186 = vmatpush.bf16.msra.mxu0 0
  %187 = vmatpush.bf16.msra.mxu0 0
  %188 = vmatpush.bf16.msra.mxu0 0
  %189 = vmatpush.bf16.msra.mxu0 %v154
  %190 = vmatpush.bf16.msra.mxu0 %v153
  %191 = vmatpush.bf16.msra.mxu0 %v152
  %192 = vmatpush.bf16.msra.mxu0 %v151
  %193 = vmatmul.bf16.gmra.mxu0 %v169
  %v194 = vpop.f32.mrf.mxu0
  %v195 = vadd.f32 %v181, %v194
  %v196 = vpop.f32.mrf.mxu0
  %v197 = vadd.f32 %v183, %v196
  %198 = vdwg.mxu0
  %v199 = vld [vmem:[%s3] sm:$0xf]
  %v200 = vld [vmem:[%s3 + $0x4] sm:$0xf]
  %v201 = vld [vmem:[%s3 + $0x8] sm:$0xf]
  %v202 = vld [vmem:[%s3 + $0xc] sm:$0xf]
  %v203 = vld [vmem:[%s3 + $0x10] sm:$0xf]
  %v204 = vld [vmem:[%s4] sm:$0xf]
  %v205 = vld [vmem:[%s4 + $0x4] sm:$0x1]
  %v206 = vld [vmem:[%s5] sm:$0xff]
  %v207 = vld [vmem:[%s5 + $0x8] sm:$0xff]
  %v208 = vld [vmem:[%s5 + $0x10] sm:$0xff]
  %v209 = vld [vmem:[%s5 + $0x18] sm:$0xff]
  %v210 = vld [vmem:[%s5 + $0x20] sm:$0xff]
  %v211 = vld [vmem:[%s6] sm:$0xff]
  %v212 = vld [vmem:[%s6 + $0x8] sm:$0xff]
  %v213 = vld [vmem:[%s6 + $0x10] sm:$0xff]
  %v214 = vld [vmem:[%s6 + $0x18] sm:$0xff]
  %v215 = vld [vmem:[%s6 + $0x20] sm:$0xff]
  %v216 = vld [vmem:[%s7] sm:$0x3]
  %vm217 = vcmask 261120
  %v218 = vsel %vm217, %v195, 0.0
  %219 = vadd.xlane.f32.xlu0 %v218
  %v220 = vpop.xlane.xlu0 %219
  %vm221 = vcmask 254976
  %v222 = vsel %vm221, %v197, 0.0
  %223 = vadd.xlane.f32.xlu0 %v222
  %v224 = vpop.xlane.xlu0 %223
  %v225 = vrcp.pop 32.0
  %v226 = vmul.f32 32.0, %v225
  %v227 = vsub.f32 1.0, %v226
  %v228 = vmul.f32 %v225, %v227
  %v229 = vadd.f32 %v225, %v228
  %vm230 = vweird.f32 %v225
  %v231 = vsel %vm230, %v225, %v229
  %v232 = vmul.f32 %v220, %v231
  %v233 = vmul.f32 %v224, %v231
  %v234 = vsub.f32 %v195, %v232
  %v235 = vsub.f32 %v197, %v233
  %v236 = vmul.f32 %v234, %v234
  %v237 = vmul.f32 %v235, %v235
  %v238 = vsel %vm217, %v236, 0.0
  %239 = vadd.xlane.f32.xlu0 %v238
  %v240 = vpop.xlane.xlu0 %239
  %v241 = vsel %vm221, %v237, 0.0
  %242 = vadd.xlane.f32.xlu0 %v241
  %v243 = vpop.xlane.xlu0 %242
  %v244 = vmul.f32 %v240, %v231
  %v245 = vmul.f32 %v243, %v231
  %v246 = vadd.f32 %v244, 1e-12
  %v247 = vadd.f32 %v245, 1e-12
  %v248 = vrsqrt.pop %v246
  %v249 = vmul.f32 %v248, %v246
  %v250 = vmul.f32 %v249, %v248
  %v251 = vmul.f32 0.5, %v250
  %v252 = vsub.f32 1.5, %v251
  %v253 = vmul.f32 %v248, %v252
  %vm254 = vweird.f32 %v246
  %vm255 = vweird.f32 %v248
  %vm256 = vmor %vm254, %vm255
  %v257 = vsel %vm256, %v248, %v253
  %v258 = vrsqrt.pop %v247
  %v259 = vmul.f32 %v258, %v247
  %v260 = vmul.f32 %v259, %v258
  %v261 = vmul.f32 0.5, %v260
  %v262 = vsub.f32 1.5, %v261
  %v263 = vmul.f32 %v258, %v262
  %vm264 = vweird.f32 %v247
  %vm265 = vweird.f32 %v258
  %vm266 = vmor %vm264, %vm265
  %v267 = vsel %vm266, %v258, %v263
  %v268 = vmul.f32 %v234, %v257
  %v269 = vmul.f32 %v235, %v267
  %v270 = vperm.slane %v216, 0
  %v271 = vmul.f32 %v268, %v270
  %v272 = vmul.f32 %v269, %v270
  %v273 = vperm.slane %v216, 1
  %v274 = vadd.f32 %v271, %v273
  %v275 = vadd.f32 %v272, %v273
  %v276 = vpack.c.bf16 %v275, %v274
  %v277 = vld [vmem:[%s8] sm:$0xf]
  %v278 = vld [vmem:[%s8 + $0x4] sm:$0xf]
  %v279 = vld [vmem:[%s8 + $0x8] sm:$0xf]
  %v280 = vld [vmem:[%s8 + $0xc] sm:$0xf]
  %v281 = vld [vmem:[%s9] sm:$0x1]
  %v283 = vperm.slane %v281, 0
  %v289 = vunpack.c.l.b16 %v277
  %v290 = vunpack.c.l.b16 %v278
  %v291 = vunpack.c.l.b16 %v279
  %v292 = vunpack.c.l.b16 %v280
  %v293 = vpack.c.b16 %v290, %v289
  %v294 = vpack.c.b16 %v292, %v291
  %v298 = vsel %vm217, %v276, 0
  %300 = vmatpush.bf16.msra.mxu0 0
  %301 = vmatpush.bf16.msra.mxu0 0
  %302 = vmatpush.bf16.msra.mxu0 0
  %303 = vmatpush.bf16.msra.mxu0 0
  %304 = vmatpush.bf16.msra.mxu0 0
  %305 = vmatpush.bf16.msra.mxu0 0
  %306 = vmatpush.bf16.msra.mxu0 %v294
  %307 = vmatpush.bf16.msra.mxu0 %v293
  %308 = vmatmul.bf16.gmra.mxu0 %v298
  %v309 = vpop.f32.mrf.mxu0
  %v310 = vadd.f32 %v283, %v309
  %v311 = vpop.f32.mrf.mxu0
  %v312 = vadd.f32 %v283, %v311
  %313 = vdwg.mxu0
  %v314 = vpack.c.bf16 %v312, %v310
  %v320 = vunpack.c.l.b16 %v199
  %v321 = vunpack.c.l.b16 %v200
  %v322 = vunpack.c.l.b16 %v201
  %v323 = vunpack.c.l.b16 %v202
  %v324 = vunpack.c.l.b16 %v203
  %v325 = vpack.c.b16 %v321, %v320
  %v326 = vpack.c.b16 %v323, %v322
  %v327 = vpack.c.b16 %v324, %v324
  %vm328 = vcmask 80896
  %v330 = vsel %vm328, %v325, 0
  %v333 = vsel %vm328, %v326, 0
  %v336 = vsel %vm328, %v327, 0
  %vm338 = vcmask 1044480
  %v340 = vsel %vm338, %v314, 0
  %342 = vmatpush.bf16.msra.mxu0 0
  %343 = vmatpush.bf16.msra.mxu0 0
  %344 = vmatpush.bf16.msra.mxu0 0
  %345 = vmatpush.bf16.msra.mxu0 0
  %346 = vmatpush.bf16.msra.mxu0 0
  %347 = vmatpush.bf16.msra.mxu0 0
  %348 = vmatpush.bf16.msra.mxu0 0
  %349 = vmatpush.bf16.msra.mxu0 %v340
  %350 = vmatmul.bf16.gmra.mxu0 %v330
  %v351 = vpop.f32.mrf.mxu0
  %v352 = vadd.f32 0.0, %v351
  %v353 = vpop.f32.mrf.mxu0
  %v354 = vadd.f32 0.0, %v353
  %355 = vmatmul.bf16.gmra.mxu0 %v333
  %v356 = vpop.f32.mrf.mxu0
  %v357 = vadd.f32 0.0, %v356
  %v358 = vpop.f32.mrf.mxu0
  %v359 = vadd.f32 0.0, %v358
  %360 = vmatmul.bf16.gmra.mxu0 %v336
  %v361 = vpop.f32.mrf.mxu0
  %v362 = vadd.f32 0.0, %v361
  %v363 = vpop.f32.mrf.mxu0
  %364 = vdwg.mxu0
  %v365 = vmul.f32 %v352, %v206
  %v366 = vmul.f32 %v354, %v207
  %v367 = vmul.f32 %v357, %v208
  %v368 = vmul.f32 %v359, %v209
  %v369 = vmul.f32 %v362, %v210
  %v370 = vpack.c.bf16 %v366, %v365
  %v371 = vpack.c.bf16 %v368, %v367
  %v372 = vpack.c.bf16 %v369, %v369
  %375 = vrot.lane.b32.xlu0 %v310, 96
  %v376 = vpop.permute.xlu0 %375
  %377 = vrot.lane.b32.xlu0 %v312, 96
  %v378 = vpop.permute.xlu0 %377
  %381 = vxpose.xlu0.b32.start [1/16] %v376, 128
  %382 = vxpose.xlu0.b32.cont [2/16] %v378, 128
  %383 = vxpose.xlu0.b32.cont [3/16] 0.0, 128
  %384 = vxpose.xlu0.b32.cont [4/16] 0.0, 128
  %385 = vxpose.xlu0.b32.cont [5/16] 0.0, 128
  %386 = vxpose.xlu0.b32.cont [6/16] 0.0, 128
  %387 = vxpose.xlu0.b32.cont [7/16] 0.0, 128
  %388 = vxpose.xlu0.b32.cont [8/16] 0.0, 128
  %389 = vxpose.xlu0.b32.cont [9/16] 0.0, 128
  %390 = vxpose.xlu0.b32.cont [10/16] 0.0, 128
  %391 = vxpose.xlu0.b32.cont [11/16] 0.0, 128
  %392 = vxpose.xlu0.b32.cont [12/16] 0.0, 128
  %393 = vxpose.xlu0.b32.cont [13/16] 0.0, 128
  %394 = vxpose.xlu0.b32.cont [14/16] 0.0, 128
  %395 = vxpose.xlu0.b32.cont [15/16] 0.0, 128
  %396 = vxpose.xlu0.b32.end [16/16] 0.0, 128
  %v397 = vpop.trf.xlu0
  %v398 = vpop.trf.xlu0
  %v399 = vpop.trf.xlu0
  %v400 = vpop.trf.xlu0
  %v401 = vpop.trf.xlu0
  %v402 = vpop.trf.xlu0
  %v403 = vpop.trf.xlu0
  %v404 = vpop.trf.xlu0
  %v405 = vpop.trf.xlu0
  %v406 = vpop.trf.xlu0
  %v407 = vpop.trf.xlu0
  %v408 = vpop.trf.xlu0
  %v409 = vpop.trf.xlu0
  %v410 = vpop.trf.xlu0
  %v411 = vpop.trf.xlu0
  %v412 = vpop.trf.xlu0
  %v413 = vpack.c.bf16 %v398, %v397
  %v414 = vpack.c.bf16 %v400, %v399
  %v416 = vsel %vm217, %v370, 0
  %v419 = vsel %vm217, %v371, 0
  %v422 = vsel %vm217, %v372, 0
  %424 = vmatpush.bf16.msra.mxu0 0
  %425 = vmatpush.bf16.msra.mxu0 0
  %426 = vmatpush.bf16.msra.mxu0 0
  %427 = vmatpush.bf16.msra.mxu0 0
  %428 = vmatpush.bf16.msra.mxu0 0
  %429 = vmatpush.bf16.msra.mxu0 0
  %430 = vmatpush.bf16.msra.mxu0 %v414
  %431 = vmatpush.bf16.msra.mxu0 %v413
  %432 = vmatmul.bf16.gmra.mxu0 %v416
  %v433 = vpop.f32.mrf.mxu0
  %v434 = vadd.f32 0.0, %v433
  %v435 = vpop.f32.mrf.mxu0
  %v436 = vadd.f32 0.0, %v435
  %437 = vmatmul.bf16.gmra.mxu0 %v419
  %v438 = vpop.f32.mrf.mxu0
  %v439 = vadd.f32 0.0, %v438
  %v440 = vpop.f32.mrf.mxu0
  %v441 = vadd.f32 0.0, %v440
  %442 = vmatmul.bf16.gmra.mxu0 %v422
  %v443 = vpop.f32.mrf.mxu0
  %v444 = vadd.f32 0.0, %v443
  %v445 = vpop.f32.mrf.mxu0
  %446 = vdwg.mxu0
  %v447 = vmul.f32 %v434, 0.35355338
  %v448 = vmul.f32 %v436, 0.35355338
  %v449 = vmul.f32 %v439, 0.35355338
  %v450 = vmul.f32 %v441, 0.35355338
  %v451 = vmul.f32 %v444, 0.35355338
  %v452 = vadd.f32 %v447, %v211
  %v453 = vadd.f32 %v448, %v212
  %v454 = vadd.f32 %v449, %v213
  %v455 = vadd.f32 %v450, %v214
  %v456 = vadd.f32 %v451, %v215
  %v457 = vsel %vm328, %v452, -inf
  %458 = vmax.xlane.f32.xlu0 %v457
  %v459 = vpop.xlane.xlu0 %458
  %v460 = vsel %vm328, %v453, -inf
  %461 = vmax.xlane.f32.xlu0 %v460
  %v462 = vpop.xlane.xlu0 %461
  %v463 = vsel %vm328, %v454, -inf
  %464 = vmax.xlane.f32.xlu0 %v463
  %v465 = vpop.xlane.xlu0 %464
  %v466 = vsel %vm328, %v455, -inf
  %467 = vmax.xlane.f32.xlu0 %v466
  %v468 = vpop.xlane.xlu0 %467
  %v469 = vsel %vm328, %v456, -inf
  %470 = vmax.xlane.f32.xlu0 %v469
  %v471 = vpop.xlane.xlu0 %470
  %v472 = vsub.f32 %v452, %v459
  %v473 = vsub.f32 %v453, %v462
  %v474 = vsub.f32 %v454, %v465
  %v475 = vsub.f32 %v455, %v468
  %v476 = vsub.f32 %v456, %v471
  %v477 = vmul.f32 %v472, 1.442695
  %v478 = vpow.pop %v477
  %v479 = vmul.f32 %v473, 1.442695
  %v480 = vpow.pop %v479
  %v481 = vmul.f32 %v474, 1.442695
  %v482 = vpow.pop %v481
  %v483 = vmul.f32 %v475, 1.442695
  %v484 = vpow.pop %v483
  %v485 = vmul.f32 %v476, 1.442695
  %v486 = vpow.pop %v485
  %v487 = vsel %vm328, %v478, 0.0
  %488 = vadd.xlane.f32.xlu0 %v487
  %v489 = vpop.xlane.xlu0 %488
  %v490 = vsel %vm328, %v480, 0.0
  %491 = vadd.xlane.f32.xlu0 %v490
  %v492 = vpop.xlane.xlu0 %491
  %v493 = vsel %vm328, %v482, 0.0
  %494 = vadd.xlane.f32.xlu0 %v493
  %v495 = vpop.xlane.xlu0 %494
  %v496 = vsel %vm328, %v484, 0.0
  %497 = vadd.xlane.f32.xlu0 %v496
  %v498 = vpop.xlane.xlu0 %497
  %v499 = vsel %vm328, %v486, 0.0
  %500 = vadd.xlane.f32.xlu0 %v499
  %v501 = vpop.xlane.xlu0 %500
  %v502 = vrcp.pop %v489
  %v503 = vrcp.pop %v492
  %v504 = vrcp.pop %v495
  %v505 = vrcp.pop %v498
  %v506 = vrcp.pop %v501
  %v507 = vmul.f32 %v478, %v502
  %v508 = vmul.f32 %v480, %v503
  %v509 = vmul.f32 %v482, %v504
  %v510 = vmul.f32 %v484, %v505
  %v511 = vmul.f32 %v486, %v506
  %v512 = vpack.c.bf16 %v508, %v507
  %v513 = vpack.c.bf16 %v510, %v509
  %v514 = vpack.c.bf16 %v511, %v511
  %516 = vrot.lane.b32.xlu0 %v314, 64
  %v517 = vpop.permute.xlu0 %516
  %v519 = vsel %vm328, %v512, 0
  %v522 = vsel %vm328, %v513, 0
  %v525 = vsel %vm328, %v514, 0
  %v528 = vsel %vm338, %v517, 0
  %530 = vmatpush.bf16.msra.mxu0 0
  %531 = vmatpush.bf16.msra.mxu0 0
  %532 = vmatpush.bf16.msra.mxu0 0
  %533 = vmatpush.bf16.msra.mxu0 0
  %534 = vmatpush.bf16.msra.mxu0 0
  %535 = vmatpush.bf16.msra.mxu0 0
  %536 = vmatpush.bf16.msra.mxu0 0
  %537 = vmatpush.bf16.msra.mxu0 %v528
  %538 = vmatmul.bf16.gmra.mxu0 %v519
  %v539 = vpop.f32.mrf.mxu0
  %v540 = vadd.f32 0.0, %v539
  %v541 = vpop.f32.mrf.mxu0
  %v542 = vadd.f32 0.0, %v541
  %543 = vmatmul.bf16.gmra.mxu0 %v522
  %v544 = vpop.f32.mrf.mxu0
  %v545 = vadd.f32 0.0, %v544
  %v546 = vpop.f32.mrf.mxu0
  %v547 = vadd.f32 0.0, %v546
  %548 = vmatmul.bf16.gmra.mxu0 %v525
  %v549 = vpop.f32.mrf.mxu0
  %v550 = vadd.f32 0.0, %v549
  %v551 = vpop.f32.mrf.mxu0
  %552 = vdwg.mxu0
  %v553 = vmul.f32 %v540, %v206
  %v554 = vmul.f32 %v542, %v207
  %v555 = vmul.f32 %v545, %v208
  %v556 = vmul.f32 %v547, %v209
  %v557 = vmul.f32 %v550, %v210
  %v558 = vpack.c.bf16 %v554, %v553
  %v559 = vpack.c.bf16 %v556, %v555
  %v560 = vpack.c.bf16 %v557, %v557
  %v563 = vunpack.c.l.b16 %v204
  %v564 = vunpack.c.l.b16 %v205
  %v565 = vpack.c.b16 %v564, %v563
  %vm566 = vcmask 326656
  %v568 = vsel %vm566, %v565, 0
  %vm570 = vcmask 1043456
  %v572 = vsel %vm570, %v560, 0
  %574 = vmatpush.bf16.msra.mxu0 0
  %575 = vmatpush.bf16.msra.mxu0 0
  %576 = vmatpush.bf16.msra.mxu0 0
  %577 = vmatpush.bf16.msra.mxu0 0
  %578 = vmatpush.bf16.msra.mxu0 0
  %579 = vmatpush.bf16.msra.mxu0 %v572
  %580 = vmatpush.bf16.msra.mxu0 %v559
  %581 = vmatpush.bf16.msra.mxu0 %v558
  %582 = vmatmul.bf16.gmra.mxu0 %v568
  %v583 = vpop.f32.mrf.mxu0
  %v584 = vadd.f32 0.0, %v583
  %v585 = vpop.f32.mrf.mxu0
  %v586 = vadd.f32 0.0, %v585
  %587 = vdwg.mxu0
  %v588 = vpack.c.bf16 %v586, %v584
  %v589 = vld [vmem:[%s10] sm:$0xf]
  %v590 = vld [vmem:[%s10 + $0x4] sm:$0xf]
  %v591 = vld [vmem:[%s10 + $0x8] sm:$0xf]
  %v592 = vld [vmem:[%s10 + $0xc] sm:$0xf]
  %v593 = vld [vmem:[%s11] sm:$0x1]
  %v595 = vperm.slane %v593, 0
  %v601 = vunpack.c.l.b16 %v589
  %v602 = vunpack.c.l.b16 %v590
  %v603 = vunpack.c.l.b16 %v591
  %v604 = vunpack.c.l.b16 %v592
  %v605 = vpack.c.b16 %v602, %v601
  %v606 = vpack.c.b16 %v604, %v603
  %v610 = vsel %vm217, %v588, 0
  %612 = vmatpush.bf16.msra.mxu0 0
  %613 = vmatpush.bf16.msra.mxu0 0
  %614 = vmatpush.bf16.msra.mxu0 0
  %615 = vmatpush.bf16.msra.mxu0 0
  %616 = vmatpush.bf16.msra.mxu0 0
  %617 = vmatpush.bf16.msra.mxu0 0
  %618 = vmatpush.bf16.msra.mxu0 %v606
  %619 = vmatpush.bf16.msra.mxu0 %v605
  %620 = vmatmul.bf16.gmra.mxu0 %v610
  %v621 = vpop.f32.mrf.mxu0
  %v622 = vadd.f32 %v595, %v621
  %v623 = vpop.f32.mrf.mxu0
  %v624 = vadd.f32 %v595, %v623
  %625 = vdwg.mxu0
  %v626 = vadd.f32 %v195, %v622
  %v627 = vadd.f32 %v197, %v624
  %v628 = vld [vmem:[%s12] sm:$0x3]
  %v629 = vsel %vm217, %v626, 0.0
  %630 = vadd.xlane.f32.xlu0 %v629
  %v631 = vpop.xlane.xlu0 %630
  %v632 = vsel %vm221, %v627, 0.0
  %633 = vadd.xlane.f32.xlu0 %v632
  %v634 = vpop.xlane.xlu0 %633
  %v635 = vmul.f32 %v631, %v231
  %v636 = vmul.f32 %v634, %v231
  %v637 = vsub.f32 %v626, %v635
  %v638 = vsub.f32 %v627, %v636
  %v639 = vmul.f32 %v637, %v637
  %v640 = vmul.f32 %v638, %v638
  %v641 = vsel %vm217, %v639, 0.0
  %642 = vadd.xlane.f32.xlu0 %v641
  %v643 = vpop.xlane.xlu0 %642
  %v644 = vsel %vm221, %v640, 0.0
  %645 = vadd.xlane.f32.xlu0 %v644
  %v646 = vpop.xlane.xlu0 %645
  %v647 = vmul.f32 %v643, %v231
  %v648 = vmul.f32 %v646, %v231
  %v649 = vadd.f32 %v647, 1e-12
  %v650 = vadd.f32 %v648, 1e-12
  %v651 = vrsqrt.pop %v649
  %v652 = vmul.f32 %v651, %v649
  %v653 = vmul.f32 %v652, %v651
  %v654 = vmul.f32 0.5, %v653
  %v655 = vsub.f32 1.5, %v654
  %v656 = vmul.f32 %v651, %v655
  %vm657 = vweird.f32 %v649
  %vm658 = vweird.f32 %v651
  %vm659 = vmor %vm657, %vm658
  %v660 = vsel %vm659, %v651, %v656
  %v661 = vrsqrt.pop %v650
  %v662 = vmul.f32 %v661, %v650
  %v663 = vmul.f32 %v662, %v661
  %v664 = vmul.f32 0.5, %v663
  %v665 = vsub.f32 1.5, %v664
  %v666 = vmul.f32 %v661, %v665
  %vm667 = vweird.f32 %v650
  %vm668 = vweird.f32 %v661
  %vm669 = vmor %vm667, %vm668
  %v670 = vsel %vm669, %v661, %v666
  %v671 = vmul.f32 %v637, %v660
  %v672 = vmul.f32 %v638, %v670
  %v673 = vperm.slane %v628, 0
  %v674 = vmul.f32 %v671, %v673
  %v675 = vmul.f32 %v672, %v673
  %v676 = vperm.slane %v628, 1
  %v677 = vadd.f32 %v674, %v676
  %v678 = vadd.f32 %v675, %v676
  %v679 = vpack.c.bf16 %v678, %v677
  %v680 = vld [vmem:[%s13] sm:$0xf]
  %v681 = vld [vmem:[%s13 + $0x4] sm:$0xf]
  %v682 = vld [vmem:[%s13 + $0x8] sm:$0xf]
  %v683 = vld [vmem:[%s13 + $0xc] sm:$0xf]
  %v684 = vld [vmem:[%s14] sm:$0x1]
  %v686 = vperm.slane %v684, 0
  %v692 = vunpack.c.l.b16 %v680
  %v693 = vunpack.c.l.b16 %v681
  %v694 = vunpack.c.l.b16 %v682
  %v695 = vunpack.c.l.b16 %v683
  %v696 = vpack.c.b16 %v693, %v692
  %v697 = vpack.c.b16 %v695, %v694
  %v701 = vsel %vm217, %v679, 0
  %703 = vmatpush.bf16.msra.mxu0 0
  %704 = vmatpush.bf16.msra.mxu0 0
  %705 = vmatpush.bf16.msra.mxu0 0
  %706 = vmatpush.bf16.msra.mxu0 0
  %707 = vmatpush.bf16.msra.mxu0 0
  %708 = vmatpush.bf16.msra.mxu0 0
  %709 = vmatpush.bf16.msra.mxu0 %v697
  %710 = vmatpush.bf16.msra.mxu0 %v696
  %711 = vmatmul.bf16.gmra.mxu0 %v701
  %v712 = vpop.f32.mrf.mxu0
  %v713 = vadd.f32 %v686, %v712
  %v714 = vpop.f32.mrf.mxu0
  %v715 = vadd.f32 %v686, %v714
  %716 = vdwg.mxu0
  %v717 = vmul.f32 %v713, 0.5
  %v718 = vmul.f32 %v715, 0.5
  %v719 = vmul.f32 %v713, 0.044715
  %v720 = vmul.f32 %v715, 0.044715
  %v721 = vmul.f32 %v719, %v713
  %v722 = vmul.f32 %v720, %v715
  %v723 = vmul.f32 %v721, %v713
  %v724 = vmul.f32 %v722, %v715
  %v725 = vadd.f32 %v713, %v723
  %v726 = vadd.f32 %v715, %v724
  %v727 = vmul.f32 %v725, 0.7978846
  %v728 = vmul.f32 %v726, 0.7978846
  %v729 = vtanh.pop %v727
  %v730 = vtanh.pop %v728
  %v731 = vadd.f32 %v729, 1.0
  %v732 = vadd.f32 %v730, 1.0
  %v733 = vmul.f32 %v717, %v731
  %v734 = vmul.f32 %v718, %v732
  %v735 = vpack.c.bf16 %v734, %v733
  %v736 = vld [vmem:[%s15] sm:$0xf]
  %v737 = vld [vmem:[%s15 + $0x4] sm:$0xf]
  %v738 = vld [vmem:[%s15 + $0x8] sm:$0xf]
  %v739 = vld [vmem:[%s15 + $0xc] sm:$0xf]
  %v740 = vld [vmem:[%s15 + $0x10] sm:$0xf]
  %v741 = vld [vmem:[%s15 + $0x14] sm:$0xf]
  %v742 = vld [vmem:[%s15 + $0x18] sm:$0xf]
  %v743 = vld [vmem:[%s15 + $0x1c] sm:$0xf]
  %v744 = vld [vmem:[%s16] sm:$0x1]
  %v746 = vperm.slane %v744, 0
  %v756 = vunpack.c.l.b16 %v736
  %v757 = vunpack.c.l.b16 %v737
  %v758 = vunpack.c.l.b16 %v738
  %v759 = vunpack.c.l.b16 %v739
  %v760 = vunpack.c.l.b16 %v740
  %v761 = vunpack.c.l.b16 %v741
  %v762 = vunpack.c.l.b16 %v742
  %v763 = vunpack.c.l.b16 %v743
  %v764 = vpack.c.b16 %v757, %v756
  %v765 = vpack.c.b16 %v759, %v758
  %v766 = vpack.c.b16 %v761, %v760
  %v767 = vpack.c.b16 %v763, %v762
  %v773 = vsel %vm167, %v735, 0
  %775 = vmatpush.bf16.msra.mxu0 0
  %776 = vmatpush.bf16.msra.mxu0 0
  %777 = vmatpush.bf16.msra.mxu0 0
  %778 = vmatpush.bf16.msra.mxu0 0
  %779 = vmatpush.bf16.msra.mxu0 %v767
  %780 = vmatpush.bf16.msra.mxu0 %v766
  %781 = vmatpush.bf16.msra.mxu0 %v765
  %782 = vmatpush.bf16.msra.mxu0 %v764
  %783 = vmatmul.bf16.gmra.mxu0 %v773
  %v784 = vpop.f32.mrf.mxu0
  %v785 = vadd.f32 %v746, %v784
  %v786 = vpop.f32.mrf.mxu0
  %v787 = vadd.f32 %v746, %v786
  %788 = vdwg.mxu0
  %v789 = vadd.f32 %v626, %v785
  %v790 = vadd.f32 %v627, %v787
  %s791 = scalar_lea.vmem %s7, 2
  %v792 = vld [vmem:[%s791] sm:$0x3]
  %v793 = vsel %vm217, %v789, 0.0
  %794 = vadd.xlane.f32.xlu0 %v793
  %v795 = vpop.xlane.xlu0 %794
  %v796 = vsel %vm221, %v790, 0.0
  %797 = vadd.xlane.f32.xlu0 %v796
  %v798 = vpop.xlane.xlu0 %797
  %v799 = vmul.f32 %v795, %v231
  %v800 = vmul.f32 %v798, %v231
  %v801 = vsub.f32 %v789, %v799
  %v802 = vsub.f32 %v790, %v800
  %v803 = vmul.f32 %v801, %v801
  %v804 = vmul.f32 %v802, %v802
  %v805 = vsel %vm217, %v803, 0.0
  %806 = vadd.xlane.f32.xlu0 %v805
  %v807 = vpop.xlane.xlu0 %806
  %v808 = vsel %vm221, %v804, 0.0
  %809 = vadd.xlane.f32.xlu0 %v808
  %v810 = vpop.xlane.xlu0 %809
  %v811 = vmul.f32 %v807, %v231
  %v812 = vmul.f32 %v810, %v231
  %v813 = vadd.f32 %v811, 1e-12
  %v814 = vadd.f32 %v812, 1e-12
  %v815 = vrsqrt.pop %v813
  %v816 = vmul.f32 %v815, %v813
  %v817 = vmul.f32 %v816, %v815
  %v818 = vmul.f32 0.5, %v817
  %v819 = vsub.f32 1.5, %v818
  %v820 = vmul.f32 %v815, %v819
  %vm821 = vweird.f32 %v813
  %vm822 = vweird.f32 %v815
  %vm823 = vmor %vm821, %vm822
  %v824 = vsel %vm823, %v815, %v820
  %v825 = vrsqrt.pop %v814
  %v826 = vmul.f32 %v825, %v814
  %v827 = vmul.f32 %v826, %v825
  %v828 = vmul.f32 0.5, %v827
  %v829 = vsub.f32 1.5, %v828
  %v830 = vmul.f32 %v825, %v829
  %vm831 = vweird.f32 %v814
  %vm832 = vweird.f32 %v825
  %vm833 = vmor %vm831, %vm832
  %v834 = vsel %vm833, %v825, %v830
  %v835 = vmul.f32 %v801, %v824
  %v836 = vmul.f32 %v802, %v834
  %v837 = vperm.slane %v792, 0
  %v838 = vmul.f32 %v835, %v837
  %v839 = vmul.f32 %v836, %v837
  %v840 = vperm.slane %v792, 1
  %v841 = vadd.f32 %v838, %v840
  %v842 = vadd.f32 %v839, %v840
  %v843 = vpack.c.bf16 %v842, %v841
  %s844 = scalar_lea.vmem %s8, 16
  %v845 = vld [vmem:[%s844] sm:$0xf]
  %v846 = vld [vmem:[%s844 + $0x4] sm:$0xf]
  %v847 = vld [vmem:[%s844 + $0x8] sm:$0xf]
  %v848 = vld [vmem:[%s844 + $0xc] sm:$0xf]
  %s849 = scalar_lea.vmem %s9, 1
  %v850 = vld [vmem:[%s849] sm:$0x1]
  %v852 = vperm.slane %v850, 0
  %v858 = vunpack.c.l.b16 %v845
  %v859 = vunpack.c.l.b16 %v846
  %v860 = vunpack.c.l.b16 %v847
  %v861 = vunpack.c.l.b16 %v848
  %v862 = vpack.c.b16 %v859, %v858
  %v863 = vpack.c.b16 %v861, %v860
  %v867 = vsel %vm217, %v843, 0
  %869 = vmatpush.bf16.msra.mxu0 0
  %870 = vmatpush.bf16.msra.mxu0 0
  %871 = vmatpush.bf16.msra.mxu0 0
  %872 = vmatpush.bf16.msra.mxu0 0
  %873 = vmatpush.bf16.msra.mxu0 0
  %874 = vmatpush.bf16.msra.mxu0 0
  %875 = vmatpush.bf16.msra.mxu0 %v863
  %876 = vmatpush.bf16.msra.mxu0 %v862
  %877 = vmatmul.bf16.gmra.mxu0 %v867
  %v878 = vpop.f32.mrf.mxu0
  %v879 = vadd.f32 %v852, %v878
  %v880 = vpop.f32.mrf.mxu0
  %v881 = vadd.f32 %v852, %v880
  %882 = vdwg.mxu0
  %v883 = vpack.c.bf16 %v881, %v879
  %v885 = vsel %vm338, %v883, 0
  %887 = vmatpush.bf16.msra.mxu0 0
  %888 = vmatpush.bf16.msra.mxu0 0
  %889 = vmatpush.bf16.msra.mxu0 0
  %890 = vmatpush.bf16.msra.mxu0 0
  %891 = vmatpush.bf16.msra.mxu0 0
  %892 = vmatpush.bf16.msra.mxu0 0
  %893 = vmatpush.bf16.msra.mxu0 0
  %894 = vmatpush.bf16.msra.mxu0 %v885
  %895 = vmatmul.bf16.gmra.mxu0 %v330
  %v896 = vpop.f32.mrf.mxu0
  %v897 = vadd.f32 0.0, %v896
  %v898 = vpop.f32.mrf.mxu0
  %v899 = vadd.f32 0.0, %v898
  %900 = vmatmul.bf16.gmra.mxu0 %v333
  %v901 = vpop.f32.mrf.mxu0
  %v902 = vadd.f32 0.0, %v901
  %v903 = vpop.f32.mrf.mxu0
  %v904 = vadd.f32 0.0, %v903
  %905 = vmatmul.bf16.gmra.mxu0 %v336
  %v906 = vpop.f32.mrf.mxu0
  %v907 = vadd.f32 0.0, %v906
  %v908 = vpop.f32.mrf.mxu0
  %909 = vdwg.mxu0
  %v910 = vmul.f32 %v897, %v206
  %v911 = vmul.f32 %v899, %v207
  %v912 = vmul.f32 %v902, %v208
  %v913 = vmul.f32 %v904, %v209
  %v914 = vmul.f32 %v907, %v210
  %v915 = vpack.c.bf16 %v911, %v910
  %v916 = vpack.c.bf16 %v913, %v912
  %v917 = vpack.c.bf16 %v914, %v914
  %920 = vrot.lane.b32.xlu0 %v879, 96
  %v921 = vpop.permute.xlu0 %920
  %922 = vrot.lane.b32.xlu0 %v881, 96
  %v923 = vpop.permute.xlu0 %922
  %926 = vxpose.xlu0.b32.start [1/16] %v921, 128
  %927 = vxpose.xlu0.b32.cont [2/16] %v923, 128
  %928 = vxpose.xlu0.b32.cont [3/16] 0.0, 128
  %929 = vxpose.xlu0.b32.cont [4/16] 0.0, 128
  %930 = vxpose.xlu0.b32.cont [5/16] 0.0, 128
  %931 = vxpose.xlu0.b32.cont [6/16] 0.0, 128
  %932 = vxpose.xlu0.b32.cont [7/16] 0.0, 128
  %933 = vxpose.xlu0.b32.cont [8/16] 0.0, 128
  %934 = vxpose.xlu0.b32.cont [9/16] 0.0, 128
  %935 = vxpose.xlu0.b32.cont [10/16] 0.0, 128
  %936 = vxpose.xlu0.b32.cont [11/16] 0.0, 128
  %937 = vxpose.xlu0.b32.cont [12/16] 0.0, 128
  %938 = vxpose.xlu0.b32.cont [13/16] 0.0, 128
  %939 = vxpose.xlu0.b32.cont [14/16] 0.0, 128
  %940 = vxpose.xlu0.b32.cont [15/16] 0.0, 128
  %941 = vxpose.xlu0.b32.end [16/16] 0.0, 128
  %v942 = vpop.trf.xlu0
  %v943 = vpop.trf.xlu0
  %v944 = vpop.trf.xlu0
  %v945 = vpop.trf.xlu0
  %v946 = vpop.trf.xlu0
  %v947 = vpop.trf.xlu0
  %v948 = vpop.trf.xlu0
  %v949 = vpop.trf.xlu0
  %v950 = vpop.trf.xlu0
  %v951 = vpop.trf.xlu0
  %v952 = vpop.trf.xlu0
  %v953 = vpop.trf.xlu0
  %v954 = vpop.trf.xlu0
  %v955 = vpop.trf.xlu0
  %v956 = vpop.trf.xlu0
  %v957 = vpop.trf.xlu0
  %v958 = vpack.c.bf16 %v943, %v942
  %v959 = vpack.c.bf16 %v945, %v944
  %v961 = vsel %vm217, %v915, 0
  %v964 = vsel %vm217, %v916, 0
  %v967 = vsel %vm217, %v917, 0
  %969 = vmatpush.bf16.msra.mxu0 0
  %970 = vmatpush.bf16.msra.mxu0 0
  %971 = vmatpush.bf16.msra.mxu0 0
  %972 = vmatpush.bf16.msra.mxu0 0
  %973 = vmatpush.bf16.msra.mxu0 0
  %974 = vmatpush.bf16.msra.mxu0 0
  %975 = vmatpush.bf16.msra.mxu0 %v959
  %976 = vmatpush.bf16.msra.mxu0 %v958
  %977 = vmatmul.bf16.gmra.mxu0 %v961
  %v978 = vpop.f32.mrf.mxu0
  %v979 = vadd.f32 0.0, %v978
  %v980 = vpop.f32.mrf.mxu0
  %v981 = vadd.f32 0.0, %v980
  %982 = vmatmul.bf16.gmra.mxu0 %v964
  %v983 = vpop.f32.mrf.mxu0
  %v984 = vadd.f32 0.0, %v983
  %v985 = vpop.f32.mrf.mxu0
  %v986 = vadd.f32 0.0, %v985
  %987 = vmatmul.bf16.gmra.mxu0 %v967
  %v988 = vpop.f32.mrf.mxu0
  %v989 = vadd.f32 0.0, %v988
  %v990 = vpop.f32.mrf.mxu0
  %991 = vdwg.mxu0
  %v992 = vmul.f32 %v979, 0.35355338
  %v993 = vmul.f32 %v981, 0.35355338
  %v994 = vmul.f32 %v984, 0.35355338
  %v995 = vmul.f32 %v986, 0.35355338
  %v996 = vmul.f32 %v989, 0.35355338
  %v997 = vadd.f32 %v992, %v211
  %v998 = vadd.f32 %v993, %v212
  %v999 = vadd.f32 %v994, %v213
  %v1000 = vadd.f32 %v995, %v214
  %v1001 = vadd.f32 %v996, %v215
  %v1002 = vsel %vm328, %v997, -inf
  %1003 = vmax.xlane.f32.xlu0 %v1002
  %v1004 = vpop.xlane.xlu0 %1003
  %v1005 = vsel %vm328, %v998, -inf
  %1006 = vmax.xlane.f32.xlu0 %v1005
  %v1007 = vpop.xlane.xlu0 %1006
  %v1008 = vsel %vm328, %v999, -inf
  %1009 = vmax.xlane.f32.xlu0 %v1008
  %v1010 = vpop.xlane.xlu0 %1009
  %v1011 = vsel %vm328, %v1000, -inf
  %1012 = vmax.xlane.f32.xlu0 %v1011
  %v1013 = vpop.xlane.xlu0 %1012
  %v1014 = vsel %vm328, %v1001, -inf
  %1015 = vmax.xlane.f32.xlu0 %v1014
  %v1016 = vpop.xlane.xlu0 %1015
  %v1017 = vsub.f32 %v997, %v1004
  %v1018 = vsub.f32 %v998, %v1007
  %v1019 = vsub.f32 %v999, %v1010
  %v1020 = vsub.f32 %v1000, %v1013
  %v1021 = vsub.f32 %v1001, %v1016
  %v1022 = vmul.f32 %v1017, 1.442695
  %v1023 = vpow.pop %v1022
  %v1024 = vmul.f32 %v1018, 1.442695
  %v1025 = vpow.pop %v1024
  %v1026 = vmul.f32 %v1019, 1.442695
  %v1027 = vpow.pop %v1026
  %v1028 = vmul.f32 %v1020, 1.442695
  %v1029 = vpow.pop %v1028
  %v1030 = vmul.f32 %v1021, 1.442695
  %v1031 = vpow.pop %v1030
  %v1032 = vsel %vm328, %v1023, 0.0
  %1033 = vadd.xlane.f32.xlu0 %v1032
  %v1034 = vpop.xlane.xlu0 %1033
  %v1035 = vsel %vm328, %v1025, 0.0
  %1036 = vadd.xlane.f32.xlu0 %v1035
  %v1037 = vpop.xlane.xlu0 %1036
  %v1038 = vsel %vm328, %v1027, 0.0
  %1039 = vadd.xlane.f32.xlu0 %v1038
  %v1040 = vpop.xlane.xlu0 %1039
  %v1041 = vsel %vm328, %v1029, 0.0
  %1042 = vadd.xlane.f32.xlu0 %v1041
  %v1043 = vpop.xlane.xlu0 %1042
  %v1044 = vsel %vm328, %v1031, 0.0
  %1045 = vadd.xlane.f32.xlu0 %v1044
  %v1046 = vpop.xlane.xlu0 %1045
  %v1047 = vrcp.pop %v1034
  %v1048 = vrcp.pop %v1037
  %v1049 = vrcp.pop %v1040
  %v1050 = vrcp.pop %v1043
  %v1051 = vrcp.pop %v1046
  %v1052 = vmul.f32 %v1023, %v1047
  %v1053 = vmul.f32 %v1025, %v1048
  %v1054 = vmul.f32 %v1027, %v1049
  %v1055 = vmul.f32 %v1029, %v1050
  %v1056 = vmul.f32 %v1031, %v1051
  %v1057 = vpack.c.bf16 %v1053, %v1052
  %v1058 = vpack.c.bf16 %v1055, %v1054
  %v1059 = vpack.c.bf16 %v1056, %v1056
  %1061 = vrot.lane.b32.xlu0 %v883, 64
  %v1062 = vpop.permute.xlu0 %1061
  %v1064 = vsel %vm328, %v1057, 0
  %v1067 = vsel %vm328, %v1058, 0
  %v1070 = vsel %vm328, %v1059, 0
  %v1073 = vsel %vm338, %v1062, 0
  %1075 = vmatpush.bf16.msra.mxu0 0
  %1076 = vmatpush.bf16.msra.mxu0 0
  %1077 = vmatpush.bf16.msra.mxu0 0
  %1078 = vmatpush.bf16.msra.mxu0 0
  %1079 = vmatpush.bf16.msra.mxu0 0
  %1080 = vmatpush.bf16.msra.mxu0 0
  %1081 = vmatpush.bf16.msra.mxu0 0
  %1082 = vmatpush.bf16.msra.mxu0 %v1073
  %1083 = vmatmul.bf16.gmra.mxu0 %v1064
  %v1084 = vpop.f32.mrf.mxu0
  %v1085 = vadd.f32 0.0, %v1084
  %v1086 = vpop.f32.mrf.mxu0
  %v1087 = vadd.f32 0.0, %v1086
  %1088 = vmatmul.bf16.gmra.mxu0 %v1067
  %v1089 = vpop.f32.mrf.mxu0
  %v1090 = vadd.f32 0.0, %v1089
  %v1091 = vpop.f32.mrf.mxu0
  %v1092 = vadd.f32 0.0, %v1091
  %1093 = vmatmul.bf16.gmra.mxu0 %v1070
  %v1094 = vpop.f32.mrf.mxu0
  %v1095 = vadd.f32 0.0, %v1094
  %v1096 = vpop.f32.mrf.mxu0
  %1097 = vdwg.mxu0
  %v1098 = vmul.f32 %v1085, %v206
  %v1099 = vmul.f32 %v1087, %v207
  %v1100 = vmul.f32 %v1090, %v208
  %v1101 = vmul.f32 %v1092, %v209
  %v1102 = vmul.f32 %v1095, %v210
  %v1103 = vpack.c.bf16 %v1099, %v1098
  %v1104 = vpack.c.bf16 %v1101, %v1100
  %v1105 = vpack.c.bf16 %v1102, %v1102
  %v1107 = vsel %vm570, %v1105, 0
  %1109 = vmatpush.bf16.msra.mxu0 0
  %1110 = vmatpush.bf16.msra.mxu0 0
  %1111 = vmatpush.bf16.msra.mxu0 0
  %1112 = vmatpush.bf16.msra.mxu0 0
  %1113 = vmatpush.bf16.msra.mxu0 0
  %1114 = vmatpush.bf16.msra.mxu0 %v1107
  %1115 = vmatpush.bf16.msra.mxu0 %v1104
  %1116 = vmatpush.bf16.msra.mxu0 %v1103
  %1117 = vmatmul.bf16.gmra.mxu0 %v568
  %v1118 = vpop.f32.mrf.mxu0
  %v1119 = vadd.f32 0.0, %v1118
  %v1120 = vpop.f32.mrf.mxu0
  %v1121 = vadd.f32 0.0, %v1120
  %1122 = vdwg.mxu0
  %v1123 = vpack.c.bf16 %v1121, %v1119
  %s1124 = scalar_lea.vmem %s10, 16
  %v1125 = vld [vmem:[%s1124] sm:$0xf]
  %v1126 = vld [vmem:[%s1124 + $0x4] sm:$0xf]
  %v1127 = vld [vmem:[%s1124 + $0x8] sm:$0xf]
  %v1128 = vld [vmem:[%s1124 + $0xc] sm:$0xf]
  %s1129 = scalar_lea.vmem %s11, 1
  %v1130 = vld [vmem:[%s1129] sm:$0x1]
  %v1132 = vperm.slane %v1130, 0
  %v1138 = vunpack.c.l.b16 %v1125
  %v1139 = vunpack.c.l.b16 %v1126
  %v1140 = vunpack.c.l.b16 %v1127
  %v1141 = vunpack.c.l.b16 %v1128
  %v1142 = vpack.c.b16 %v1139, %v1138
  %v1143 = vpack.c.b16 %v1141, %v1140
  %v1147 = vsel %vm217, %v1123, 0
  %1149 = vmatpush.bf16.msra.mxu0 0
  %1150 = vmatpush.bf16.msra.mxu0 0
  %1151 = vmatpush.bf16.msra.mxu0 0
  %1152 = vmatpush.bf16.msra.mxu0 0
  %1153 = vmatpush.bf16.msra.mxu0 0
  %1154 = vmatpush.bf16.msra.mxu0 0
  %1155 = vmatpush.bf16.msra.mxu0 %v1143
  %1156 = vmatpush.bf16.msra.mxu0 %v1142
  %1157 = vmatmul.bf16.gmra.mxu0 %v1147
  %v1158 = vpop.f32.mrf.mxu0
  %v1159 = vadd.f32 %v1132, %v1158
  %v1160 = vpop.f32.mrf.mxu0
  %v1161 = vadd.f32 %v1132, %v1160
  %1162 = vdwg.mxu0
  %v1163 = vadd.f32 %v789, %v1159
  %v1164 = vadd.f32 %v790, %v1161
  %s1165 = scalar_lea.vmem %s12, 2
  %v1166 = vld [vmem:[%s1165] sm:$0x3]
  %v1167 = vsel %vm217, %v1163, 0.0
  %1168 = vadd.xlane.f32.xlu0 %v1167
  %v1169 = vpop.xlane.xlu0 %1168
  %v1170 = vsel %vm221, %v1164, 0.0
  %1171 = vadd.xlane.f32.xlu0 %v1170
  %v1172 = vpop.xlane.xlu0 %1171
  %v1173 = vmul.f32 %v1169, %v231
  %v1174 = vmul.f32 %v1172, %v231
  %v1175 = vsub.f32 %v1163, %v1173
  %v1176 = vsub.f32 %v1164, %v1174
  %v1177 = vmul.f32 %v1175, %v1175
  %v1178 = vmul.f32 %v1176, %v1176
  %v1179 = vsel %vm217, %v1177, 0.0
  %1180 = vadd.xlane.f32.xlu0 %v1179
  %v1181 = vpop.xlane.xlu0 %1180
  %v1182 = vsel %vm221, %v1178, 0.0
  %1183 = vadd.xlane.f32.xlu0 %v1182
  %v1184 = vpop.xlane.xlu0 %1183
  %v1185 = vmul.f32 %v1181, %v231
  %v1186 = vmul.f32 %v1184, %v231
  %v1187 = vadd.f32 %v1185, 1e-12
  %v1188 = vadd.f32 %v1186, 1e-12
  %v1189 = vrsqrt.pop %v1187
  %v1190 = vmul.f32 %v1189, %v1187
  %v1191 = vmul.f32 %v1190, %v1189
  %v1192 = vmul.f32 0.5, %v1191
  %v1193 = vsub.f32 1.5, %v1192
  %v1194 = vmul.f32 %v1189, %v1193
  %vm1195 = vweird.f32 %v1187
  %vm1196 = vweird.f32 %v1189
  %vm1197 = vmor %vm1195, %vm1196
  %v1198 = vsel %vm1197, %v1189, %v1194
  %v1199 = vrsqrt.pop %v1188
  %v1200 = vmul.f32 %v1199, %v1188
  %v1201 = vmul.f32 %v1200, %v1199
  %v1202 = vmul.f32 0.5, %v1201
  %v1203 = vsub.f32 1.5, %v1202
  %v1204 = vmul.f32 %v1199, %v1203
  %vm1205 = vweird.f32 %v1188
  %vm1206 = vweird.f32 %v1199
  %vm1207 = vmor %vm1205, %vm1206
  %v1208 = vsel %vm1207, %v1199, %v1204
  %v1209 = vmul.f32 %v1175, %v1198
  %v1210 = vmul.f32 %v1176, %v1208
  %v1211 = vperm.slane %v1166, 0
  %v1212 = vmul.f32 %v1209, %v1211
  %v1213 = vmul.f32 %v1210, %v1211
  %v1214 = vperm.slane %v1166, 1
  %v1215 = vadd.f32 %v1212, %v1214
  %v1216 = vadd.f32 %v1213, %v1214
  %v1217 = vpack.c.bf16 %v1216, %v1215
  %s1218 = scalar_lea.vmem %s13, 16
  %v1219 = vld [vmem:[%s1218] sm:$0xf]
  %v1220 = vld [vmem:[%s1218 + $0x4] sm:$0xf]
  %v1221 = vld [vmem:[%s1218 + $0x8] sm:$0xf]
  %v1222 = vld [vmem:[%s1218 + $0xc] sm:$0xf]
  %s1223 = scalar_lea.vmem %s14, 1
  %v1224 = vld [vmem:[%s1223] sm:$0x1]
  %v1226 = vperm.slane %v1224, 0
  %v1232 = vunpack.c.l.b16 %v1219
  %v1233 = vunpack.c.l.b16 %v1220
  %v1234 = vunpack.c.l.b16 %v1221
  %v1235 = vunpack.c.l.b16 %v1222
  %v1236 = vpack.c.b16 %v1233, %v1232
  %v1237 = vpack.c.b16 %v1235, %v1234
  %v1241 = vsel %vm217, %v1217, 0
  %1243 = vmatpush.bf16.msra.mxu0 0
  %1244 = vmatpush.bf16.msra.mxu0 0
  %1245 = vmatpush.bf16.msra.mxu0 0
  %1246 = vmatpush.bf16.msra.mxu0 0
  %1247 = vmatpush.bf16.msra.mxu0 0
  %1248 = vmatpush.bf16.msra.mxu0 0
  %1249 = vmatpush.bf16.msra.mxu0 %v1237
  %1250 = vmatpush.bf16.msra.mxu0 %v1236
  %1251 = vmatmul.bf16.gmra.mxu0 %v1241
  %v1252 = vpop.f32.mrf.mxu0
  %v1253 = vadd.f32 %v1226, %v1252
  %v1254 = vpop.f32.mrf.mxu0
  %v1255 = vadd.f32 %v1226, %v1254
  %1256 = vdwg.mxu0
  %v1257 = vmul.f32 %v1253, 0.5
  %v1258 = vmul.f32 %v1255, 0.5
  %v1259 = vmul.f32 %v1253, 0.044715
  %v1260 = vmul.f32 %v1255, 0.044715
  %v1261 = vmul.f32 %v1259, %v1253
  %v1262 = vmul.f32 %v1260, %v1255
  %v1263 = vmul.f32 %v1261, %v1253
  %v1264 = vmul.f32 %v1262, %v1255
  %v1265 = vadd.f32 %v1253, %v1263
  %v1266 = vadd.f32 %v1255, %v1264
  %v1267 = vmul.f32 %v1265, 0.7978846
  %v1268 = vmul.f32 %v1266, 0.7978846
  %v1269 = vtanh.pop %v1267
  %v1270 = vtanh.pop %v1268
  %v1271 = vadd.f32 %v1269, 1.0
  %v1272 = vadd.f32 %v1270, 1.0
  %v1273 = vmul.f32 %v1257, %v1271
  %v1274 = vmul.f32 %v1258, %v1272
  %v1275 = vpack.c.bf16 %v1274, %v1273
  %s1276 = scalar_lea.vmem %s15, 32
  %v1277 = vld [vmem:[%s1276] sm:$0xf]
  %v1278 = vld [vmem:[%s1276 + $0x4] sm:$0xf]
  %v1279 = vld [vmem:[%s1276 + $0x8] sm:$0xf]
  %v1280 = vld [vmem:[%s1276 + $0xc] sm:$0xf]
  %v1281 = vld [vmem:[%s1276 + $0x10] sm:$0xf]
  %v1282 = vld [vmem:[%s1276 + $0x14] sm:$0xf]
  %v1283 = vld [vmem:[%s1276 + $0x18] sm:$0xf]
  %v1284 = vld [vmem:[%s1276 + $0x1c] sm:$0xf]
  %s1285 = scalar_lea.vmem %s16, 1
  %v1286 = vld [vmem:[%s1285] sm:$0x1]
  %v1288 = vperm.slane %v1286, 0
  %v1298 = vunpack.c.l.b16 %v1277
  %v1299 = vunpack.c.l.b16 %v1278
  %v1300 = vunpack.c.l.b16 %v1279
  %v1301 = vunpack.c.l.b16 %v1280
  %v1302 = vunpack.c.l.b16 %v1281
  %v1303 = vunpack.c.l.b16 %v1282
  %v1304 = vunpack.c.l.b16 %v1283
  %v1305 = vunpack.c.l.b16 %v1284
  %v1306 = vpack.c.b16 %v1299, %v1298
  %v1307 = vpack.c.b16 %v1301, %v1300
  %v1308 = vpack.c.b16 %v1303, %v1302
  %v1309 = vpack.c.b16 %v1305, %v1304
  %v1315 = vsel %vm167, %v1275, 0
  %1317 = vmatpush.bf16.msra.mxu0 0
  %1318 = vmatpush.bf16.msra.mxu0 0
  %1319 = vmatpush.bf16.msra.mxu0 0
  %1320 = vmatpush.bf16.msra.mxu0 0
  %1321 = vmatpush.bf16.msra.mxu0 %v1309
  %1322 = vmatpush.bf16.msra.mxu0 %v1308
  %1323 = vmatpush.bf16.msra.mxu0 %v1307
  %1324 = vmatpush.bf16.msra.mxu0 %v1306
  %1325 = vmatmul.bf16.gmra.mxu0 %v1315
  %v1326 = vpop.f32.mrf.mxu0
  %v1327 = vadd.f32 %v1288, %v1326
  %v1328 = vpop.f32.mrf.mxu0
  %v1329 = vadd.f32 %v1288, %v1328
  %1330 = vdwg.mxu0
  %v1331 = vadd.f32 %v1163, %v1327
  %v1332 = vadd.f32 %v1164, %v1329
  %v1333 = vld [vmem:[%s17] sm:$0x1]
  %v1334 = vld [vmem:[%s18] sm:$0x1]
  %v1335 = vsel %vm217, %v1331, 0.0
  %1336 = vadd.xlane.f32.xlu0 %v1335
  %v1337 = vpop.xlane.xlu0 %1336
  %v1338 = vsel %vm221, %v1332, 0.0
  %1339 = vadd.xlane.f32.xlu0 %v1338
  %v1340 = vpop.xlane.xlu0 %1339
  %v1341 = vmul.f32 %v1337, %v231
  %v1342 = vmul.f32 %v1340, %v231
  %v1343 = vsub.f32 %v1331, %v1341
  %v1344 = vsub.f32 %v1332, %v1342
  %v1345 = vmul.f32 %v1343, %v1343
  %v1346 = vmul.f32 %v1344, %v1344
  %v1347 = vsel %vm217, %v1345, 0.0
  %1348 = vadd.xlane.f32.xlu0 %v1347
  %v1349 = vpop.xlane.xlu0 %1348
  %v1350 = vsel %vm221, %v1346, 0.0
  %1351 = vadd.xlane.f32.xlu0 %v1350
  %v1352 = vpop.xlane.xlu0 %1351
  %v1353 = vmul.f32 %v1349, %v231
  %v1354 = vmul.f32 %v1352, %v231
  %v1355 = vadd.f32 %v1353, 1e-12
  %v1356 = vadd.f32 %v1354, 1e-12
  %v1357 = vrsqrt.pop %v1355
  %v1358 = vmul.f32 %v1357, %v1355
  %v1359 = vmul.f32 %v1358, %v1357
  %v1360 = vmul.f32 0.5, %v1359
  %v1361 = vsub.f32 1.5, %v1360
  %v1362 = vmul.f32 %v1357, %v1361
  %vm1363 = vweird.f32 %v1355
  %vm1364 = vweird.f32 %v1357
  %vm1365 = vmor %vm1363, %vm1364
  %v1366 = vsel %vm1365, %v1357, %v1362
  %v1367 = vrsqrt.pop %v1356
  %v1368 = vmul.f32 %v1367, %v1356
  %v1369 = vmul.f32 %v1368, %v1367
  %v1370 = vmul.f32 0.5, %v1369
  %v1371 = vsub.f32 1.5, %v1370
  %v1372 = vmul.f32 %v1367, %v1371
  %vm1373 = vweird.f32 %v1356
  %vm1374 = vweird.f32 %v1367
  %vm1375 = vmor %vm1373, %vm1374
  %v1376 = vsel %vm1375, %v1367, %v1372
  %v1377 = vmul.f32 %v1343, %v1366
  %v1378 = vmul.f32 %v1344, %v1376
  %v1380 = vperm.slane %v1333, 0
  %v1382 = vmul.f32 %v1377, %v1380
  %v1383 = vmul.f32 %v1378, %v1380
  %v1385 = vperm.slane %v1334, 0
  %v1387 = vadd.f32 %v1382, %v1385
  %v1388 = vadd.f32 %v1383, %v1385
  %1389 = vst.msk [vmem:[%s19] sm:$0xff] %vm217, %v1387
  %1390 = vst.msk [vmem:[%s19 + $0x8] sm:$0x3] %vm221, %v1388
  // Predicated region
  $region78: #{modified_vit_forward.1} parent=0 // pred_check
    _
  $region79: #{modified_vit_forward.1} parent=0 // pred_check_branch
    %1392 = sbr.rel (0) target = $region81
  $region80: #{modified_vit_forward.1} parent=0 // pred_region
    _
  $region81: #{modified_vit_forward.1} parent=0 // pred_fallthru
    _
  // Predicated region
  $region82: #{modified_vit_forward.1} parent=0 // pred_check
    _
  $region83: #{modified_vit_forward.1} parent=0 // pred_check_branch
    %1394 = sbr.rel (0) target = $region85
  $region84: #{modified_vit_forward.1} parent=0 // pred_region
    _
  $region85: #{modified_vit_forward.1} parent=0 // pred_fallthru
    _

</llo_original>
